<compile_context>
chip_gen: v7x
topology: tpu7x:2x2x1
jax: 0.10.0
libtpu: 0.0.40
codegen_flags: <defaults>
</compile_context>

<pallas_src>
import functools
import math

import jax
import jax.numpy as jnp
import numpy as np
from jax import lax
from jax.experimental import pallas as pl
from jax.experimental.pallas import tpu as pltpu


def _mha_kernel(*refs, nhead, d_k, has_mask):
    """Fused per-batch-element MHA: QKV projections + per-head attention + output proj.

    inputs : q/k/v (1, S, E); head-major weights wqh/wkh/wvh (nhead, E, d_k);
             biases bqh/bkh/bvh (nhead, 1, d_k); woh (nhead, d_k, E); bo (1, E);
             optional mask (S, S).
    output : one lane-dense (1, S, E) block.
    scratch: ctx (nhead*S, d_k) f32 -- the flat buffer torch's .view(N, S, -1) reinterprets.
    """
    if has_mask:
        (q_ref, k_ref, v_ref, wqh_ref, wkh_ref, wvh_ref,
         bqh_ref, bkh_ref, bvh_ref, woh_ref, bo_ref, mask_ref,
         o_ref, ctx_ref) = refs
    else:
        (q_ref, k_ref, v_ref, wqh_ref, wkh_ref, wvh_ref,
         bqh_ref, bkh_ref, bvh_ref, woh_ref, bo_ref,
         o_ref, ctx_ref) = refs

    S = q_ref.shape[1]
    cdt = q_ref.dtype                         # MXU operand dtype (float32 or bfloat16)
    scale = 1.0 / math.sqrt(d_k)

    xq = q_ref[0]                             # (S, E)
    xk = k_ref[0]
    xv = v_ref[0]

    if has_mask:
        neg = mask_ref[...] == 0              # hoisted: computed once per grid step

    nt = (((1,), (1,)), ((), ()))             # contract dim-1 with dim-1: A @ B.T w/o transpose

    for h in range(nhead):                    # static, unrolled head loop
        # Projections: weights already per-head and pre-transposed -> plain matmuls.
        qh = (jnp.dot(xq, wqh_ref[h], preferred_element_type=jnp.float32)
              + bqh_ref[h]) * scale           # fold 1/sqrt(d_k) into q (cheaper than scaling SxS)
        kh = jnp.dot(xk, wkh_ref[h], preferred_element_type=jnp.float32) + bkh_ref[h]
        vh = jnp.dot(xv, wvh_ref[h], preferred_element_type=jnp.float32) + bvh_ref[h]

        s = lax.dot_general(qh.astype(cdt), kh.astype(cdt), nt,
                            preferred_element_type=jnp.float32)          # (S, S) scores
        if has_mask:
            s = jnp.where(neg, -jnp.inf, s)   # masked_fill(mask == 0, -inf)

        m = jnp.max(s, axis=-1, keepdims=True)                           # stable softmax
        p = jnp.exp(s - m)
        p = p * pl.reciprocal(jnp.sum(p, axis=-1, keepdims=True), approx=True)

        # NOTE: torch forward calls self.dropout(out) but discards the result -> no-op.
        oh = jnp.dot(p.astype(cdt), vh.astype(cdt),
                     preferred_element_type=jnp.float32)                 # (S, d_k)
        ctx_ref[pl.ds(h * S, S), :] = oh                                 # contiguous head block

    # Fused output projection reproducing torch's .view(N, S, -1) reinterpretation:
    # row s of the viewed (S, E) context is [ctx[s*nhead + r, :] for r in range(nhead)],
    # hence  out = sum_r ctx[r::nhead, :] @ w_o[:, r*d_k:(r+1)*d_k].T  (+ b_o).
    out = jnp.dot(ctx_ref[pl.ds(0, S, stride=nhead), :].astype(cdt), woh_ref[0],
                  preferred_element_type=jnp.float32)
    for r in range(1, nhead):
        a_r = ctx_ref[pl.ds(r, S, stride=nhead), :].astype(cdt)          # strided sublane load
        out = out + jnp.dot(a_r, woh_ref[r], preferred_element_type=jnp.float32)
    o_ref[0] = (out + bo_ref[...]).astype(o_ref.dtype)                   # single lane-dense store


def multi_head_attention(params, query, key, value, mask=None):
    """MultiHeadAttention forward.  Compute dtype follows query.dtype (pass bfloat16
    inputs on v6e/v7x for native MXU throughput); accumulation is always float32."""
    N, S, E = query.shape
    nhead = params["nhead"]
    assert E % nhead == 0
    d_k = E // nhead
    cdt = query.dtype

    # ---- one-time weight preparation (trace time; removes every in-kernel transpose) ----
    def per_head_in(w):
        # (E, E) torch (out, in) -> (nhead, E, d_k) so  x @ w[h] == (x @ W.T)[:, h*d_k:(h+1)*d_k]
        return jnp.transpose(w.reshape(nhead, d_k, E), (0, 2, 1)).astype(cdt)

    wqh = per_head_in(params["wq"])
    wkh = per_head_in(params["wk"])
    wvh = per_head_in(params["wv"])
    bqh = params["bq"].reshape(nhead, 1, d_k).astype(jnp.float32)
    bkh = params["bk"].reshape(nhead, 1, d_k).astype(jnp.float32)
    bvh = params["bv"].reshape(nhead, 1, d_k).astype(jnp.float32)
    # w_o split along its *input* axis into head-column blocks, pre-transposed:
    # woh[r] = w_o[:, r*d_k:(r+1)*d_k].T  -> (d_k, E)
    woh = jnp.transpose(params["wo"].reshape(E, nhead, d_k), (1, 2, 0)).astype(cdt)
    bo = params["bo"].reshape(1, E).astype(jnp.float32)

    q = query.astype(cdt)
    k = key.astype(cdt)
    v = value.astype(cdt)

    has_mask = mask is not None
    kernel = functools.partial(_mha_kernel, nhead=nhead, d_k=d_k, has_mask=has_mask)

    # q/k/v/out are pipelined over the (N,) batch grid; weight/bias/mask operands use
    # constant index maps so they are DMA'd once and never re-fetched across grid steps.
    # TODO(synk): at production E/S, single-buffer these grid-invariant operands
    #             (pl.Buffered(1) / whole-array VMEM) to halve their resident footprint.
    in_specs = [
        pl.BlockSpec((1, S, E), lambda n: (n, 0, 0)),          # query
        pl.BlockSpec((1, S, E), lambda n: (n, 0, 0)),          # key
        pl.BlockSpec((1, S, E), lambda n: (n, 0, 0)),          # value
        pl.BlockSpec((nhead, E, d_k), lambda n: (0, 0, 0)),    # w_q (head-major, pre-T)
        pl.BlockSpec((nhead, E, d_k), lambda n: (0, 0, 0)),    # w_k
        pl.BlockSpec((nhead, E, d_k), lambda n: (0, 0, 0)),    # w_v
        pl.BlockSpec((nhead, 1, d_k), lambda n: (0, 0, 0)),    # b_q
        pl.BlockSpec((nhead, 1, d_k), lambda n: (0, 0, 0)),    # b_k
        pl.BlockSpec((nhead, 1, d_k), lambda n: (0, 0, 0)),    # b_v
        pl.BlockSpec((nhead, d_k, E), lambda n: (0, 0, 0)),    # w_o (head-column blocks, pre-T)
        pl.BlockSpec((1, E), lambda n: (0, 0)),                # b_o
    ]
    args = [q, k, v, wqh, wkh, wvh, bqh, bkh, bvh, woh, bo]
    if has_mask:
        in_specs.append(pl.BlockSpec((S, S), lambda n: (0, 0)))
        args.append(mask.astype(jnp.float32))

    return pl.pallas_call(
        kernel,
        out_shape=jax.ShapeDtypeStruct((N, S, E), query.dtype),
        grid=(N,),
        in_specs=in_specs,
        out_specs=pl.BlockSpec((1, S, E), lambda n: (n, 0, 0)),
        scratch_shapes=[pltpu.VMEM((nhead * S, d_k), jnp.float32)],   # flat .view() buffer
        compiler_params=pltpu.CompilerParams(dimension_semantics=("parallel",)),
    )(*args)


def reference(params, query, key, value, mask=None):
    """Pure-JAX re-implementation of the exact torch forward semantics (float32)."""
    N, S, E = query.shape
    nhead = params["nhead"]
    d_k = E // nhead

    def linear(x, w, b):
        return x @ w.T + b

    q = linear(query, params["wq"], params["bq"]).reshape(N, S, nhead, d_k).transpose(0, 2, 1, 3)
    k = linear(key, params["wk"], params["bk"]).reshape(N, S, nhead, d_k).transpose(0, 2, 1, 3)
    v = linear(value, params["wv"], params["bv"]).reshape(N, S, nhead, d_k).transpose(0, 2, 1, 3)

    s = jnp.einsum("nhqd,nhkd->nhqk", q, k) / math.sqrt(d_k)
    if mask is not None:
        s = jnp.where(mask == 0, -jnp.inf, s)
    p = jax.nn.softmax(s, axis=-1)
    o = jnp.einsum("nhqk,nhkd->nhqd", p, v)     # (N, nhead, S, d_k)
    o = o.reshape(N, S, E)                      # torch .view() reinterpretation reproduced
    return linear(o, params["wo"], params["bo"])


if __name__ == "__main__":
    N, S, d_model, nhead = 2, 8, 32, 4

    key = jax.random.PRNGKey(0)
    ks = jax.random.split(key, 12)

    def w_init(k):
        return jax.random.normal(k, (d_model, d_model), jnp.float32) * 0.1

    def b_init(k):
        return jax.random.normal(k, (d_model,), jnp.float32) * 0.01

    params = {
        "nhead": nhead,
        "wq": w_init(ks[0]), "bq": b_init(ks[1]),
        "wk": w_init(ks[2]), "bk": b_init(ks[3]),
        "wv": w_init(ks[4]), "bv": b_init(ks[5]),
        "wo": w_init(ks[6]), "bo": b_init(ks[7]),
    }

    query = jax.random.normal(ks[8], (N, S, d_model), jnp.float32)
    key_t = jax.random.normal(ks[9], (N, S, d_model), jnp.float32)
    value = jax.random.normal(ks[10], (N, S, d_model), jnp.float32)

    # 1) float32, no mask.  (approx reciprocal in the softmax -> tolerance ~1e-2)
    out = jax.block_until_ready(multi_head_attention(params, query, key_t, value, mask=None))
    ref = reference(params, query, key_t, value, mask=None)
    assert out.shape == (N, S, d_model)
    np.testing.assert_allclose(np.asarray(out), np.asarray(ref), rtol=1e-2, atol=1e-2)

    # 2) float32, causal mask (exercises the masked path; no fully-masked rows -> no NaNs).
    mask = jnp.tril(jnp.ones((S, S), jnp.float32))
    out_m = jax.block_until_ready(multi_head_attention(params, query, key_t, value, mask=mask))
    ref_m = reference(params, query, key_t, value, mask=mask)
    np.testing.assert_allclose(np.asarray(out_m), np.asarray(ref_m), rtol=1e-2, atol=1e-2)

    # 3) bfloat16 compute path (v6e/v7x: bf16 MXU operands, f32 accumulation).
    out_bf = jax.block_until_ready(
        multi_head_attention(params,
                             query.astype(jnp.bfloat16),
                             key_t.astype(jnp.bfloat16),
                             value.astype(jnp.bfloat16),
                             mask=None))
    np.testing.assert_allclose(np.asarray(out_bf.astype(jnp.float32)), np.asarray(ref),
                               rtol=6e-2, atol=6e-2)

    print("KERNEL_OK")
</pallas_src>

<mosaic_0001>
module attributes {stable_mosaic.version = 11 : i64} {
  func.func @_mha_kernel(%arg0: i32, %arg1: memref<1x8x32xf32, #tpu.memory_space<vmem>>, %arg2: memref<1x8x32xf32, #tpu.memory_space<vmem>>, %arg3: memref<1x8x32xf32, #tpu.memory_space<vmem>>, %arg4: memref<4x32x8xf32, #tpu.memory_space<vmem>>, %arg5: memref<4x32x8xf32, #tpu.memory_space<vmem>>, %arg6: memref<4x32x8xf32, #tpu.memory_space<vmem>>, %arg7: memref<4x1x8xf32, #tpu.memory_space<vmem>>, %arg8: memref<4x1x8xf32, #tpu.memory_space<vmem>>, %arg9: memref<4x1x8xf32, #tpu.memory_space<vmem>>, %arg10: memref<4x8x32xf32, #tpu.memory_space<vmem>>, %arg11: memref<1x32xf32, #tpu.memory_space<vmem>>, %arg12: memref<1x8x32xf32, #tpu.memory_space<vmem>>, %arg13: memref<32x8xf32, #tpu.memory_space<vmem>>) attributes {dimension_semantics = [#tpu.dimension_semantics<parallel>], iteration_bounds = array<i64: 2>, scalar_prefetch = 0 : i64, scratch_operands = 1 : i64, tpu.core_type = #tpu.core_type<tc>, window_params = [{transform_indices = @transform_0, window_bounds = array<i64: 1, 8, 32>}, {transform_indices = @transform_1, window_bounds = array<i64: 1, 8, 32>}, {transform_indices = @transform_2, window_bounds = array<i64: 1, 8, 32>}, {pipeline_mode = #tpu.pipeline_mode<synchronous>, transform_indices = @transform_3, window_bounds = array<i64: 4, 32, 8>}, {pipeline_mode = #tpu.pipeline_mode<synchronous>, transform_indices = @transform_4, window_bounds = array<i64: 4, 32, 8>}, {pipeline_mode = #tpu.pipeline_mode<synchronous>, transform_indices = @transform_5, window_bounds = array<i64: 4, 32, 8>}, {pipeline_mode = #tpu.pipeline_mode<synchronous>, transform_indices = @transform_6, window_bounds = array<i64: 4, 1, 8>}, {pipeline_mode = #tpu.pipeline_mode<synchronous>, transform_indices = @transform_7, window_bounds = array<i64: 4, 1, 8>}, {pipeline_mode = #tpu.pipeline_mode<synchronous>, transform_indices = @transform_8, window_bounds = array<i64: 4, 1, 8>}, {pipeline_mode = #tpu.pipeline_mode<synchronous>, transform_indices = @transform_9, window_bounds = array<i64: 4, 8, 32>}, {pipeline_mode = #tpu.pipeline_mode<synchronous>, transform_indices = @transform_10, window_bounds = array<i64: 1, 32>}, {transform_indices = @transform_11, window_bounds = array<i64: 1, 8, 32>}]} {
    %c0 = arith.constant 0 : index
    %c0_0 = arith.constant 0 : index
    %c0_1 = arith.constant 0 : index
    %0 = vector.load %arg1[%c0, %c0_0, %c0_1] : memref<1x8x32xf32, #tpu.memory_space<vmem>>, vector<1x8x32xf32>
    %1 = vector.shape_cast %0 : vector<1x8x32xf32> to vector<8x32xf32>
    %c0_2 = arith.constant 0 : index
    %c0_3 = arith.constant 0 : index
    %c0_4 = arith.constant 0 : index
    %2 = vector.load %arg2[%c0_2, %c0_3, %c0_4] : memref<1x8x32xf32, #tpu.memory_space<vmem>>, vector<1x8x32xf32>
    %3 = vector.shape_cast %2 : vector<1x8x32xf32> to vector<8x32xf32>
    %c0_5 = arith.constant 0 : index
    %c0_6 = arith.constant 0 : index
    %c0_7 = arith.constant 0 : index
    %4 = vector.load %arg3[%c0_5, %c0_6, %c0_7] : memref<1x8x32xf32, #tpu.memory_space<vmem>>, vector<1x8x32xf32>
    %5 = vector.shape_cast %4 : vector<1x8x32xf32> to vector<8x32xf32>
    %c0_8 = arith.constant 0 : index
    %c0_9 = arith.constant 0 : index
    %c0_10 = arith.constant 0 : index
    %6 = vector.load %arg4[%c0_8, %c0_9, %c0_10] : memref<4x32x8xf32, #tpu.memory_space<vmem>>, vector<1x32x8xf32>
    %7 = vector.shape_cast %6 : vector<1x32x8xf32> to vector<32x8xf32>
    %cst = arith.constant dense<0.000000e+00> : vector<8x8xf32>
    %8 = tpu.matmul %1, %7, %cst {dimension_numbers = #tpu.dot_dimension_numbers<[1], [0], [0], [1], [0, 0, 1, 1], [], []>} : vector<8x32xf32>, vector<32x8xf32>, vector<8x8xf32> -> vector<8x8xf32>
    %c0_11 = arith.constant 0 : index
    %c0_12 = arith.constant 0 : index
    %c0_13 = arith.constant 0 : index
    %9 = vector.load %arg7[%c0_11, %c0_12, %c0_13] : memref<4x1x8xf32, #tpu.memory_space<vmem>>, vector<1x1x8xf32>
    %10 = vector.shape_cast %9 : vector<1x1x8xf32> to vector<1x8xf32>
    %11 = vector.broadcast %10 : vector<1x8xf32> to vector<8x8xf32>
    %12 = arith.addf %8, %11 : vector<8x8xf32>
    %cst_14 = arith.constant 0.353553385 : f32
    %13 = vector.broadcast %cst_14 : f32 to vector<8x8xf32>
    %14 = arith.mulf %12, %13 : vector<8x8xf32>
    %c0_15 = arith.constant 0 : index
    %c0_16 = arith.constant 0 : index
    %c0_17 = arith.constant 0 : index
    %15 = vector.load %arg5[%c0_15, %c0_16, %c0_17] : memref<4x32x8xf32, #tpu.memory_space<vmem>>, vector<1x32x8xf32>
    %16 = vector.shape_cast %15 : vector<1x32x8xf32> to vector<32x8xf32>
    %cst_18 = arith.constant dense<0.000000e+00> : vector<8x8xf32>
    %17 = tpu.matmul %3, %16, %cst_18 {dimension_numbers = #tpu.dot_dimension_numbers<[1], [0], [0], [1], [0, 0, 1, 1], [], []>} : vector<8x32xf32>, vector<32x8xf32>, vector<8x8xf32> -> vector<8x8xf32>
    %c0_19 = arith.constant 0 : index
    %c0_20 = arith.constant 0 : index
    %c0_21 = arith.constant 0 : index
    %18 = vector.load %arg8[%c0_19, %c0_20, %c0_21] : memref<4x1x8xf32, #tpu.memory_space<vmem>>, vector<1x1x8xf32>
    %19 = vector.shape_cast %18 : vector<1x1x8xf32> to vector<1x8xf32>
    %20 = vector.broadcast %19 : vector<1x8xf32> to vector<8x8xf32>
    %21 = arith.addf %17, %20 : vector<8x8xf32>
    %c0_22 = arith.constant 0 : index
    %c0_23 = arith.constant 0 : index
    %c0_24 = arith.constant 0 : index
    %22 = vector.load %arg6[%c0_22, %c0_23, %c0_24] : memref<4x32x8xf32, #tpu.memory_space<vmem>>, vector<1x32x8xf32>
    %23 = vector.shape_cast %22 : vector<1x32x8xf32> to vector<32x8xf32>
    %cst_25 = arith.constant dense<0.000000e+00> : vector<8x8xf32>
    %24 = tpu.matmul %5, %23, %cst_25 {dimension_numbers = #tpu.dot_dimension_numbers<[1], [0], [0], [1], [0, 0, 1, 1], [], []>} : vector<8x32xf32>, vector<32x8xf32>, vector<8x8xf32> -> vector<8x8xf32>
    %c0_26 = arith.constant 0 : index
    %c0_27 = arith.constant 0 : index
    %c0_28 = arith.constant 0 : index
    %25 = vector.load %arg9[%c0_26, %c0_27, %c0_28] : memref<4x1x8xf32, #tpu.memory_space<vmem>>, vector<1x1x8xf32>
    %26 = vector.shape_cast %25 : vector<1x1x8xf32> to vector<1x8xf32>
    %27 = vector.broadcast %26 : vector<1x8xf32> to vector<8x8xf32>
    %28 = arith.addf %24, %27 : vector<8x8xf32>
    %cst_29 = arith.constant dense<0.000000e+00> : vector<8x8xf32>
    %29 = tpu.matmul %14, %21, %cst_29 {dimension_numbers = #tpu.dot_dimension_numbers<[1], [1], [0], [0], [0, 0, 1, 0], [], []>} : vector<8x8xf32>, vector<8x8xf32>, vector<8x8xf32> -> vector<8x8xf32>
    %cst_30 = arith.constant dense<0xFF800000> : vector<8xf32>
    %30 = vector.multi_reduction <maximumf>, %29, %cst_30 [1] : vector<8x8xf32> to vector<8xf32>
    %31 = vector.shape_cast %30 : vector<8xf32> to vector<8x1xf32>
    %32 = vector.broadcast %31 : vector<8x1xf32> to vector<8x8xf32>
    %33 = arith.subf %29, %32 : vector<8x8xf32>
    %34 = math.exp %33 : vector<8x8xf32>
    %cst_31 = arith.constant dense<0.000000e+00> : vector<8xf32>
    %35 = vector.multi_reduction <add>, %34, %cst_31 [1] : vector<8x8xf32> to vector<8xf32>
    %36 = vector.shape_cast %35 : vector<8xf32> to vector<8x1xf32>
    %37 = tpu.reciprocal %36 {approx = true} : vector<8x1xf32> -> vector<8x1xf32>
    %38 = vector.broadcast %37 : vector<8x1xf32> to vector<8x8xf32>
    %39 = arith.mulf %34, %38 : vector<8x8xf32>
    %cst_32 = arith.constant dense<0.000000e+00> : vector<8x8xf32>
    %40 = tpu.matmul %39, %28, %cst_32 {dimension_numbers = #tpu.dot_dimension_numbers<[1], [0], [0], [1], [0, 0, 1, 1], [], []>} : vector<8x8xf32>, vector<8x8xf32>, vector<8x8xf32> -> vector<8x8xf32>
    %c0_33 = arith.constant 0 : index
    %c0_34 = arith.constant 0 : index
    %41 = vector.load %arg13[%c0_33, %c0_34] : memref<32x8xf32, #tpu.memory_space<vmem>>, vector<8x8xf32>
    tpu.vector_store %arg13[%c0_33, %c0_34], %40 {strides = array<i32>} : memref<32x8xf32, #tpu.memory_space<vmem>>, vector<8x8xf32>,
    %c1 = arith.constant 1 : index
    %c0_35 = arith.constant 0 : index
    %c0_36 = arith.constant 0 : index
    %42 = vector.load %arg4[%c1, %c0_35, %c0_36] : memref<4x32x8xf32, #tpu.memory_space<vmem>>, vector<1x32x8xf32>
    %43 = vector.shape_cast %42 : vector<1x32x8xf32> to vector<32x8xf32>
    %cst_37 = arith.constant dense<0.000000e+00> : vector<8x8xf32>
    %44 = tpu.matmul %1, %43, %cst_37 {dimension_numbers = #tpu.dot_dimension_numbers<[1], [0], [0], [1], [0, 0, 1, 1], [], []>} : vector<8x32xf32>, vector<32x8xf32>, vector<8x8xf32> -> vector<8x8xf32>
    %c1_38 = arith.constant 1 : index
    %c0_39 = arith.constant 0 : index
    %c0_40 = arith.constant 0 : index
    %45 = vector.load %arg7[%c1_38, %c0_39, %c0_40] : memref<4x1x8xf32, #tpu.memory_space<vmem>>, vector<1x1x8xf32>
    %46 = vector.shape_cast %45 : vector<1x1x8xf32> to vector<1x8xf32>
    %47 = vector.broadcast %46 : vector<1x8xf32> to vector<8x8xf32>
    %48 = arith.addf %44, %47 : vector<8x8xf32>
    %cst_41 = arith.constant 0.353553385 : f32
    %49 = vector.broadcast %cst_41 : f32 to vector<8x8xf32>
    %50 = arith.mulf %48, %49 : vector<8x8xf32>
    %c1_42 = arith.constant 1 : index
    %c0_43 = arith.constant 0 : index
    %c0_44 = arith.constant 0 : index
    %51 = vector.load %arg5[%c1_42, %c0_43, %c0_44] : memref<4x32x8xf32, #tpu.memory_space<vmem>>, vector<1x32x8xf32>
    %52 = vector.shape_cast %51 : vector<1x32x8xf32> to vector<32x8xf32>
    %cst_45 = arith.constant dense<0.000000e+00> : vector<8x8xf32>
    %53 = tpu.matmul %3, %52, %cst_45 {dimension_numbers = #tpu.dot_dimension_numbers<[1], [0], [0], [1], [0, 0, 1, 1], [], []>} : vector<8x32xf32>, vector<32x8xf32>, vector<8x8xf32> -> vector<8x8xf32>
    %c1_46 = arith.constant 1 : index
    %c0_47 = arith.constant 0 : index
    %c0_48 = arith.constant 0 : index
    %54 = vector.load %arg8[%c1_46, %c0_47, %c0_48] : memref<4x1x8xf32, #tpu.memory_space<vmem>>, vector<1x1x8xf32>
    %55 = vector.shape_cast %54 : vector<1x1x8xf32> to vector<1x8xf32>
    %56 = vector.broadcast %55 : vector<1x8xf32> to vector<8x8xf32>
    %57 = arith.addf %53, %56 : vector<8x8xf32>
    %c1_49 = arith.constant 1 : index
    %c0_50 = arith.constant 0 : index
    %c0_51 = arith.constant 0 : index
    %58 = vector.load %arg6[%c1_49, %c0_50, %c0_51] : memref<4x32x8xf32, #tpu.memory_space<vmem>>, vector<1x32x8xf32>
    %59 = vector.shape_cast %58 : vector<1x32x8xf32> to vector<32x8xf32>
    %cst_52 = arith.constant dense<0.000000e+00> : vector<8x8xf32>
    %60 = tpu.matmul %5, %59, %cst_52 {dimension_numbers = #tpu.dot_dimension_numbers<[1], [0], [0], [1], [0, 0, 1, 1], [], []>} : vector<8x32xf32>, vector<32x8xf32>, vector<8x8xf32> -> vector<8x8xf32>
    %c1_53 = arith.constant 1 : index
    %c0_54 = arith.constant 0 : index
    %c0_55 = arith.constant 0 : index
    %61 = vector.load %arg9[%c1_53, %c0_54, %c0_55] : memref<4x1x8xf32, #tpu.memory_space<vmem>>, vector<1x1x8xf32>
    %62 = vector.shape_cast %61 : vector<1x1x8xf32> to vector<1x8xf32>
    %63 = vector.broadcast %62 : vector<1x8xf32> to vector<8x8xf32>
    %64 = arith.addf %60, %63 : vector<8x8xf32>
    %cst_56 = arith.constant dense<0.000000e+00> : vector<8x8xf32>
    %65 = tpu.matmul %50, %57, %cst_56 {dimension_numbers = #tpu.dot_dimension_numbers<[1], [1], [0], [0], [0, 0, 1, 0], [], []>} : vector<8x8xf32>, vector<8x8xf32>, vector<8x8xf32> -> vector<8x8xf32>
    %cst_57 = arith.constant dense<0xFF800000> : vector<8xf32>
    %66 = vector.multi_reduction <maximumf>, %65, %cst_57 [1] : vector<8x8xf32> to vector<8xf32>
    %67 = vector.shape_cast %66 : vector<8xf32> to vector<8x1xf32>
    %68 = vector.broadcast %67 : vector<8x1xf32> to vector<8x8xf32>
    %69 = arith.subf %65, %68 : vector<8x8xf32>
    %70 = math.exp %69 : vector<8x8xf32>
    %cst_58 = arith.constant dense<0.000000e+00> : vector<8xf32>
    %71 = vector.multi_reduction <add>, %70, %cst_58 [1] : vector<8x8xf32> to vector<8xf32>
    %72 = vector.shape_cast %71 : vector<8xf32> to vector<8x1xf32>
    %73 = tpu.reciprocal %72 {approx = true} : vector<8x1xf32> -> vector<8x1xf32>
    %74 = vector.broadcast %73 : vector<8x1xf32> to vector<8x8xf32>
    %75 = arith.mulf %70, %74 : vector<8x8xf32>
    %cst_59 = arith.constant dense<0.000000e+00> : vector<8x8xf32>
    %76 = tpu.matmul %75, %64, %cst_59 {dimension_numbers = #tpu.dot_dimension_numbers<[1], [0], [0], [1], [0, 0, 1, 1], [], []>} : vector<8x8xf32>, vector<8x8xf32>, vector<8x8xf32> -> vector<8x8xf32>
    %c8 = arith.constant 8 : index
    %c0_60 = arith.constant 0 : index
    %77 = vector.load %arg13[%c8, %c0_60] : memref<32x8xf32, #tpu.memory_space<vmem>>, vector<8x8xf32>
    tpu.vector_store %arg13[%c8, %c0_60], %76 {strides = array<i32>} : memref<32x8xf32, #tpu.memory_space<vmem>>, vector<8x8xf32>,
    %c2 = arith.constant 2 : index
    %c0_61 = arith.constant 0 : index
    %c0_62 = arith.constant 0 : index
    %78 = vector.load %arg4[%c2, %c0_61, %c0_62] : memref<4x32x8xf32, #tpu.memory_space<vmem>>, vector<1x32x8xf32>
    %79 = vector.shape_cast %78 : vector<1x32x8xf32> to vector<32x8xf32>
    %cst_63 = arith.constant dense<0.000000e+00> : vector<8x8xf32>
    %80 = tpu.matmul %1, %79, %cst_63 {dimension_numbers = #tpu.dot_dimension_numbers<[1], [0], [0], [1], [0, 0, 1, 1], [], []>} : vector<8x32xf32>, vector<32x8xf32>, vector<8x8xf32> -> vector<8x8xf32>
    %c2_64 = arith.constant 2 : index
    %c0_65 = arith.constant 0 : index
    %c0_66 = arith.constant 0 : index
    %81 = vector.load %arg7[%c2_64, %c0_65, %c0_66] : memref<4x1x8xf32, #tpu.memory_space<vmem>>, vector<1x1x8xf32>
    %82 = vector.shape_cast %81 : vector<1x1x8xf32> to vector<1x8xf32>
    %83 = vector.broadcast %82 : vector<1x8xf32> to vector<8x8xf32>
    %84 = arith.addf %80, %83 : vector<8x8xf32>
    %cst_67 = arith.constant 0.353553385 : f32
    %85 = vector.broadcast %cst_67 : f32 to vector<8x8xf32>
    %86 = arith.mulf %84, %85 : vector<8x8xf32>
    %c2_68 = arith.constant 2 : index
    %c0_69 = arith.constant 0 : index
    %c0_70 = arith.constant 0 : index
    %87 = vector.load %arg5[%c2_68, %c0_69, %c0_70] : memref<4x32x8xf32, #tpu.memory_space<vmem>>, vector<1x32x8xf32>
    %88 = vector.shape_cast %87 : vector<1x32x8xf32> to vector<32x8xf32>
    %cst_71 = arith.constant dense<0.000000e+00> : vector<8x8xf32>
    %89 = tpu.matmul %3, %88, %cst_71 {dimension_numbers = #tpu.dot_dimension_numbers<[1], [0], [0], [1], [0, 0, 1, 1], [], []>} : vector<8x32xf32>, vector<32x8xf32>, vector<8x8xf32> -> vector<8x8xf32>
    %c2_72 = arith.constant 2 : index
    %c0_73 = arith.constant 0 : index
    %c0_74 = arith.constant 0 : index
    %90 = vector.load %arg8[%c2_72, %c0_73, %c0_74] : memref<4x1x8xf32, #tpu.memory_space<vmem>>, vector<1x1x8xf32>
    %91 = vector.shape_cast %90 : vector<1x1x8xf32> to vector<1x8xf32>
    %92 = vector.broadcast %91 : vector<1x8xf32> to vector<8x8xf32>
    %93 = arith.addf %89, %92 : vector<8x8xf32>
    %c2_75 = arith.constant 2 : index
    %c0_76 = arith.constant 0 : index
    %c0_77 = arith.constant 0 : index
    %94 = vector.load %arg6[%c2_75, %c0_76, %c0_77] : memref<4x32x8xf32, #tpu.memory_space<vmem>>, vector<1x32x8xf32>
    %95 = vector.shape_cast %94 : vector<1x32x8xf32> to vector<32x8xf32>
    %cst_78 = arith.constant dense<0.000000e+00> : vector<8x8xf32>
    %96 = tpu.matmul %5, %95, %cst_78 {dimension_numbers = #tpu.dot_dimension_numbers<[1], [0], [0], [1], [0, 0, 1, 1], [], []>} : vector<8x32xf32>, vector<32x8xf32>, vector<8x8xf32> -> vector<8x8xf32>
    %c2_79 = arith.constant 2 : index
    %c0_80 = arith.constant 0 : index
    %c0_81 = arith.constant 0 : index
    %97 = vector.load %arg9[%c2_79, %c0_80, %c0_81] : memref<4x1x8xf32, #tpu.memory_space<vmem>>, vector<1x1x8xf32>
    %98 = vector.shape_cast %97 : vector<1x1x8xf32> to vector<1x8xf32>
    %99 = vector.broadcast %98 : vector<1x8xf32> to vector<8x8xf32>
    %100 = arith.addf %96, %99 : vector<8x8xf32>
    %cst_82 = arith.constant dense<0.000000e+00> : vector<8x8xf32>
    %101 = tpu.matmul %86, %93, %cst_82 {dimension_numbers = #tpu.dot_dimension_numbers<[1], [1], [0], [0], [0, 0, 1, 0], [], []>} : vector<8x8xf32>, vector<8x8xf32>, vector<8x8xf32> -> vector<8x8xf32>
    %cst_83 = arith.constant dense<0xFF800000> : vector<8xf32>
    %102 = vector.multi_reduction <maximumf>, %101, %cst_83 [1] : vector<8x8xf32> to vector<8xf32>
    %103 = vector.shape_cast %102 : vector<8xf32> to vector<8x1xf32>
    %104 = vector.broadcast %103 : vector<8x1xf32> to vector<8x8xf32>
    %105 = arith.subf %101, %104 : vector<8x8xf32>
    %106 = math.exp %105 : vector<8x8xf32>
    %cst_84 = arith.constant dense<0.000000e+00> : vector<8xf32>
    %107 = vector.multi_reduction <add>, %106, %cst_84 [1] : vector<8x8xf32> to vector<8xf32>
    %108 = vector.shape_cast %107 : vector<8xf32> to vector<8x1xf32>
    %109 = tpu.reciprocal %108 {approx = true} : vector<8x1xf32> -> vector<8x1xf32>
    %110 = vector.broadcast %109 : vector<8x1xf32> to vector<8x8xf32>
    %111 = arith.mulf %106, %110 : vector<8x8xf32>
    %cst_85 = arith.constant dense<0.000000e+00> : vector<8x8xf32>
    %112 = tpu.matmul %111, %100, %cst_85 {dimension_numbers = #tpu.dot_dimension_numbers<[1], [0], [0], [1], [0, 0, 1, 1], [], []>} : vector<8x8xf32>, vector<8x8xf32>, vector<8x8xf32> -> vector<8x8xf32>
    %c16 = arith.constant 16 : index
    %c0_86 = arith.constant 0 : index
    %113 = vector.load %arg13[%c16, %c0_86] : memref<32x8xf32, #tpu.memory_space<vmem>>, vector<8x8xf32>
    tpu.vector_store %arg13[%c16, %c0_86], %112 {strides = array<i32>} : memref<32x8xf32, #tpu.memory_space<vmem>>, vector<8x8xf32>,
    %c3 = arith.constant 3 : index
    %c0_87 = arith.constant 0 : index
    %c0_88 = arith.constant 0 : index
    %114 = vector.load %arg4[%c3, %c0_87, %c0_88] : memref<4x32x8xf32, #tpu.memory_space<vmem>>, vector<1x32x8xf32>
    %115 = vector.shape_cast %114 : vector<1x32x8xf32> to vector<32x8xf32>
    %cst_89 = arith.constant dense<0.000000e+00> : vector<8x8xf32>
    %116 = tpu.matmul %1, %115, %cst_89 {dimension_numbers = #tpu.dot_dimension_numbers<[1], [0], [0], [1], [0, 0, 1, 1], [], []>} : vector<8x32xf32>, vector<32x8xf32>, vector<8x8xf32> -> vector<8x8xf32>
    %c3_90 = arith.constant 3 : index
    %c0_91 = arith.constant 0 : index
    %c0_92 = arith.constant 0 : index
    %117 = vector.load %arg7[%c3_90, %c0_91, %c0_92] : memref<4x1x8xf32, #tpu.memory_space<vmem>>, vector<1x1x8xf32>
    %118 = vector.shape_cast %117 : vector<1x1x8xf32> to vector<1x8xf32>
    %119 = vector.broadcast %118 : vector<1x8xf32> to vector<8x8xf32>
    %120 = arith.addf %116, %119 : vector<8x8xf32>
    %cst_93 = arith.constant 0.353553385 : f32
    %121 = vector.broadcast %cst_93 : f32 to vector<8x8xf32>
    %122 = arith.mulf %120, %121 : vector<8x8xf32>
    %c3_94 = arith.constant 3 : index
    %c0_95 = arith.constant 0 : index
    %c0_96 = arith.constant 0 : index
    %123 = vector.load %arg5[%c3_94, %c0_95, %c0_96] : memref<4x32x8xf32, #tpu.memory_space<vmem>>, vector<1x32x8xf32>
    %124 = vector.shape_cast %123 : vector<1x32x8xf32> to vector<32x8xf32>
    %cst_97 = arith.constant dense<0.000000e+00> : vector<8x8xf32>
    %125 = tpu.matmul %3, %124, %cst_97 {dimension_numbers = #tpu.dot_dimension_numbers<[1], [0], [0], [1], [0, 0, 1, 1], [], []>} : vector<8x32xf32>, vector<32x8xf32>, vector<8x8xf32> -> vector<8x8xf32>
    %c3_98 = arith.constant 3 : index
    %c0_99 = arith.constant 0 : index
    %c0_100 = arith.constant 0 : index
    %126 = vector.load %arg8[%c3_98, %c0_99, %c0_100] : memref<4x1x8xf32, #tpu.memory_space<vmem>>, vector<1x1x8xf32>
    %127 = vector.shape_cast %126 : vector<1x1x8xf32> to vector<1x8xf32>
    %128 = vector.broadcast %127 : vector<1x8xf32> to vector<8x8xf32>
    %129 = arith.addf %125, %128 : vector<8x8xf32>
    %c3_101 = arith.constant 3 : index
    %c0_102 = arith.constant 0 : index
    %c0_103 = arith.constant 0 : index
    %130 = vector.load %arg6[%c3_101, %c0_102, %c0_103] : memref<4x32x8xf32, #tpu.memory_space<vmem>>, vector<1x32x8xf32>
    %131 = vector.shape_cast %130 : vector<1x32x8xf32> to vector<32x8xf32>
    %cst_104 = arith.constant dense<0.000000e+00> : vector<8x8xf32>
    %132 = tpu.matmul %5, %131, %cst_104 {dimension_numbers = #tpu.dot_dimension_numbers<[1], [0], [0], [1], [0, 0, 1, 1], [], []>} : vector<8x32xf32>, vector<32x8xf32>, vector<8x8xf32> -> vector<8x8xf32>
    %c3_105 = arith.constant 3 : index
    %c0_106 = arith.constant 0 : index
    %c0_107 = arith.constant 0 : index
    %133 = vector.load %arg9[%c3_105, %c0_106, %c0_107] : memref<4x1x8xf32, #tpu.memory_space<vmem>>, vector<1x1x8xf32>
    %134 = vector.shape_cast %133 : vector<1x1x8xf32> to vector<1x8xf32>
    %135 = vector.broadcast %134 : vector<1x8xf32> to vector<8x8xf32>
    %136 = arith.addf %132, %135 : vector<8x8xf32>
    %cst_108 = arith.constant dense<0.000000e+00> : vector<8x8xf32>
    %137 = tpu.matmul %122, %129, %cst_108 {dimension_numbers = #tpu.dot_dimension_numbers<[1], [1], [0], [0], [0, 0, 1, 0], [], []>} : vector<8x8xf32>, vector<8x8xf32>, vector<8x8xf32> -> vector<8x8xf32>
    %cst_109 = arith.constant dense<0xFF800000> : vector<8xf32>
    %138 = vector.multi_reduction <maximumf>, %137, %cst_109 [1] : vector<8x8xf32> to vector<8xf32>
    %139 = vector.shape_cast %138 : vector<8xf32> to vector<8x1xf32>
    %140 = vector.broadcast %139 : vector<8x1xf32> to vector<8x8xf32>
    %141 = arith.subf %137, %140 : vector<8x8xf32>
    %142 = math.exp %141 : vector<8x8xf32>
    %cst_110 = arith.constant dense<0.000000e+00> : vector<8xf32>
    %143 = vector.multi_reduction <add>, %142, %cst_110 [1] : vector<8x8xf32> to vector<8xf32>
    %144 = vector.shape_cast %143 : vector<8xf32> to vector<8x1xf32>
    %145 = tpu.reciprocal %144 {approx = true} : vector<8x1xf32> -> vector<8x1xf32>
    %146 = vector.broadcast %145 : vector<8x1xf32> to vector<8x8xf32>
    %147 = arith.mulf %142, %146 : vector<8x8xf32>
    %cst_111 = arith.constant dense<0.000000e+00> : vector<8x8xf32>
    %148 = tpu.matmul %147, %136, %cst_111 {dimension_numbers = #tpu.dot_dimension_numbers<[1], [0], [0], [1], [0, 0, 1, 1], [], []>} : vector<8x8xf32>, vector<8x8xf32>, vector<8x8xf32> -> vector<8x8xf32>
    %c24 = arith.constant 24 : index
    %c0_112 = arith.constant 0 : index
    %149 = vector.load %arg13[%c24, %c0_112] : memref<32x8xf32, #tpu.memory_space<vmem>>, vector<8x8xf32>
    tpu.vector_store %arg13[%c24, %c0_112], %148 {strides = array<i32>} : memref<32x8xf32, #tpu.memory_space<vmem>>, vector<8x8xf32>,
    %c0_113 = arith.constant 0 : index
    %c0_114 = arith.constant 0 : index
    %150 = tpu.strided_load %arg13[%c0_113, %c0_114] {strides = array<i32: 4, 1>} : memref<32x8xf32, #tpu.memory_space<vmem>>, vector<8x8xf32>
    %c0_115 = arith.constant 0 : index
    %c0_116 = arith.constant 0 : index
    %c0_117 = arith.constant 0 : index
    %151 = vector.load %arg10[%c0_115, %c0_116, %c0_117] : memref<4x8x32xf32, #tpu.memory_space<vmem>>, vector<1x8x32xf32>
    %152 = vector.shape_cast %151 : vector<1x8x32xf32> to vector<8x32xf32>
    %cst_118 = arith.constant dense<0.000000e+00> : vector<8x32xf32>
    %153 = tpu.matmul %150, %152, %cst_118 {dimension_numbers = #tpu.dot_dimension_numbers<[1], [0], [0], [1], [0, 0, 1, 1], [], []>} : vector<8x8xf32>, vector<8x32xf32>, vector<8x32xf32> -> vector<8x32xf32>
    %c1_119 = arith.constant 1 : index
    %c0_120 = arith.constant 0 : index
    %154 = tpu.strided_load %arg13[%c1_119, %c0_120] {strides = array<i32: 4, 1>} : memref<32x8xf32, #tpu.memory_space<vmem>>, vector<8x8xf32>
    %c1_121 = arith.constant 1 : index
    %c0_122 = arith.constant 0 : index
    %c0_123 = arith.constant 0 : index
    %155 = vector.load %arg10[%c1_121, %c0_122, %c0_123] : memref<4x8x32xf32, #tpu.memory_space<vmem>>, vector<1x8x32xf32>
    %156 = vector.shape_cast %155 : vector<1x8x32xf32> to vector<8x32xf32>
    %cst_124 = arith.constant dense<0.000000e+00> : vector<8x32xf32>
    %157 = tpu.matmul %154, %156, %cst_124 {dimension_numbers = #tpu.dot_dimension_numbers<[1], [0], [0], [1], [0, 0, 1, 1], [], []>} : vector<8x8xf32>, vector<8x32xf32>, vector<8x32xf32> -> vector<8x32xf32>
    %158 = arith.addf %153, %157 : vector<8x32xf32>
    %c2_125 = arith.constant 2 : index
    %c0_126 = arith.constant 0 : index
    %159 = tpu.strided_load %arg13[%c2_125, %c0_126] {strides = array<i32: 4, 1>} : memref<32x8xf32, #tpu.memory_space<vmem>>, vector<8x8xf32>
    %c2_127 = arith.constant 2 : index
    %c0_128 = arith.constant 0 : index
    %c0_129 = arith.constant 0 : index
    %160 = vector.load %arg10[%c2_127, %c0_128, %c0_129] : memref<4x8x32xf32, #tpu.memory_space<vmem>>, vector<1x8x32xf32>
    %161 = vector.shape_cast %160 : vector<1x8x32xf32> to vector<8x32xf32>
    %cst_130 = arith.constant dense<0.000000e+00> : vector<8x32xf32>
    %162 = tpu.matmul %159, %161, %cst_130 {dimension_numbers = #tpu.dot_dimension_numbers<[1], [0], [0], [1], [0, 0, 1, 1], [], []>} : vector<8x8xf32>, vector<8x32xf32>, vector<8x32xf32> -> vector<8x32xf32>
    %163 = arith.addf %158, %162 : vector<8x32xf32>
    %c3_131 = arith.constant 3 : index
    %c0_132 = arith.constant 0 : index
    %164 = tpu.strided_load %arg13[%c3_131, %c0_132] {strides = array<i32: 4, 1>} : memref<32x8xf32, #tpu.memory_space<vmem>>, vector<8x8xf32>
    %c3_133 = arith.constant 3 : index
    %c0_134 = arith.constant 0 : index
    %c0_135 = arith.constant 0 : index
    %165 = vector.load %arg10[%c3_133, %c0_134, %c0_135] : memref<4x8x32xf32, #tpu.memory_space<vmem>>, vector<1x8x32xf32>
    %166 = vector.shape_cast %165 : vector<1x8x32xf32> to vector<8x32xf32>
    %cst_136 = arith.constant dense<0.000000e+00> : vector<8x32xf32>
    %167 = tpu.matmul %164, %166, %cst_136 {dimension_numbers = #tpu.dot_dimension_numbers<[1], [0], [0], [1], [0, 0, 1, 1], [], []>} : vector<8x8xf32>, vector<8x32xf32>, vector<8x32xf32> -> vector<8x32xf32>
    %168 = arith.addf %163, %167 : vector<8x32xf32>
    %c0_137 = arith.constant 0 : index
    %c0_138 = arith.constant 0 : index
    %169 = vector.load %arg11[%c0_137, %c0_138] : memref<1x32xf32, #tpu.memory_space<vmem>>, vector<1x32xf32>
    %170 = vector.broadcast %169 : vector<1x32xf32> to vector<8x32xf32>
    %171 = arith.addf %168, %170 : vector<8x32xf32>
    %c0_139 = arith.constant 0 : index
    %c0_140 = arith.constant 0 : index
    %c0_141 = arith.constant 0 : index
    %172 = vector.load %arg12[%c0_139, %c0_140, %c0_141] : memref<1x8x32xf32, #tpu.memory_space<vmem>>, vector<1x8x32xf32>
    %173 = vector.shape_cast %172 : vector<1x8x32xf32> to vector<8x32xf32>
    %174 = vector.shape_cast %171 : vector<8x32xf32> to vector<1x8x32xf32>
    tpu.vector_store %arg12[%c0_139, %c0_140, %c0_141], %174 {strides = array<i32>} : memref<1x8x32xf32, #tpu.memory_space<vmem>>, vector<1x8x32xf32>,
    return
  }
  func.func @transform_0(%arg0: i32) -> (i32, i32, i32) {
    %c0_i32 = arith.constant 0 : i32
    %c0_i32_0 = arith.constant 0 : i32
    %c0_i32_1 = arith.constant 0 : i32
    return %arg0, %c0_i32, %c0_i32_0 : i32, i32, i32
  }
  func.func @transform_1(%arg0: i32) -> (i32, i32, i32) {
    %c0_i32 = arith.constant 0 : i32
    %c0_i32_0 = arith.constant 0 : i32
    %c0_i32_1 = arith.constant 0 : i32
    return %arg0, %c0_i32, %c0_i32_0 : i32, i32, i32
  }
  func.func @transform_2(%arg0: i32) -> (i32, i32, i32) {
    %c0_i32 = arith.constant 0 : i32
    %c0_i32_0 = arith.constant 0 : i32
    %c0_i32_1 = arith.constant 0 : i32
    return %arg0, %c0_i32, %c0_i32_0 : i32, i32, i32
  }
  func.func @transform_3(%arg0: i32) -> (i32, i32, i32) {
    %c0_i32 = arith.constant 0 : i32
    %c0_i32_0 = arith.constant 0 : i32
    %c0_i32_1 = arith.constant 0 : i32
    %c0_i32_2 = arith.constant 0 : i32
    return %c0_i32, %c0_i32_0, %c0_i32_1 : i32, i32, i32
  }
  func.func @transform_4(%arg0: i32) -> (i32, i32, i32) {
    %c0_i32 = arith.constant 0 : i32
    %c0_i32_0 = arith.constant 0 : i32
    %c0_i32_1 = arith.constant 0 : i32
    %c0_i32_2 = arith.constant 0 : i32
    return %c0_i32, %c0_i32_0, %c0_i32_1 : i32, i32, i32
  }
  func.func @transform_5(%arg0: i32) -> (i32, i32, i32) {
    %c0_i32 = arith.constant 0 : i32
    %c0_i32_0 = arith.constant 0 : i32
    %c0_i32_1 = arith.constant 0 : i32
    %c0_i32_2 = arith.constant 0 : i32
    return %c0_i32, %c0_i32_0, %c0_i32_1 : i32, i32, i32
  }
  func.func @transform_6(%arg0: i32) -> (i32, i32, i32) {
    %c0_i32 = arith.constant 0 : i32
    %c0_i32_0 = arith.constant 0 : i32
    %c0_i32_1 = arith.constant 0 : i32
    %c0_i32_2 = arith.constant 0 : i32
    return %c0_i32, %c0_i32_0, %c0_i32_1 : i32, i32, i32
  }
  func.func @transform_7(%arg0: i32) -> (i32, i32, i32) {
    %c0_i32 = arith.constant 0 : i32
    %c0_i32_0 = arith.constant 0 : i32
    %c0_i32_1 = arith.constant 0 : i32
    %c0_i32_2 = arith.constant 0 : i32
    return %c0_i32, %c0_i32_0, %c0_i32_1 : i32, i32, i32
  }
  func.func @transform_8(%arg0: i32) -> (i32, i32, i32) {
    %c0_i32 = arith.constant 0 : i32
    %c0_i32_0 = arith.constant 0 : i32
    %c0_i32_1 = arith.constant 0 : i32
    %c0_i32_2 = arith.constant 0 : i32
    return %c0_i32, %c0_i32_0, %c0_i32_1 : i32, i32, i32
  }
  func.func @transform_9(%arg0: i32) -> (i32, i32, i32) {
    %c0_i32 = arith.constant 0 : i32
    %c0_i32_0 = arith.constant 0 : i32
    %c0_i32_1 = arith.constant 0 : i32
    %c0_i32_2 = arith.constant 0 : i32
    return %c0_i32, %c0_i32_0, %c0_i32_1 : i32, i32, i32
  }
  func.func @transform_10(%arg0: i32) -> (i32, i32) {
    %c0_i32 = arith.constant 0 : i32
    %c0_i32_0 = arith.constant 0 : i32
    %c0_i32_1 = arith.constant 0 : i32
    return %c0_i32, %c0_i32_0 : i32, i32
  }
  func.func @transform_11(%arg0: i32) -> (i32, i32, i32) {
    %c0_i32 = arith.constant 0 : i32
    %c0_i32_0 = arith.constant 0 : i32
    %c0_i32_1 = arith.constant 0 : i32
    return %arg0, %c0_i32, %c0_i32_0 : i32, i32, i32
  }
}

</mosaic_0001>

<llo_original>
// kernel: tpu_custom_call.1
$region0: #{tpu_custom_call.1}
  #allocation0 [shape = 'u32[]', space=smem, size = 0x4, offset = 0x4, fixed_abs, tag = 'smem constant byte address 0x4 - core index']
  #allocation1 [shape = 'u32[144,128]{1,0:T(1,128)}', space=vmem, size = 0x12000, scoped, tag = 'internal scratch']
  #allocation2 [shape = 'f32[32,8]{1,0:T(8,128)}', space=vmem, size = 0x4000, scoped, tag = 'scratch operand']
  %s0 = inlined_call_operand.vmem [shape: f32[2,8,32], index: 0, kind: input, shape index: {}]
  %s1 = inlined_call_operand.vmem [shape: f32[2,8,32], index: 1, kind: input, shape index: {}]
  %s2 = inlined_call_operand.vmem [shape: f32[2,8,32], index: 2, kind: input, shape index: {}]
  %s3 = inlined_call_operand.vmem [shape: f32[4,32,8], index: 3, kind: input, shape index: {}]
  %s4 = inlined_call_operand.vmem [shape: f32[4,32,8], index: 4, kind: input, shape index: {}]
  %s5 = inlined_call_operand.vmem [shape: f32[4,32,8], index: 5, kind: input, shape index: {}]
  %s6 = inlined_call_operand.vmem [shape: f32[4,1,8], index: 6, kind: input, shape index: {}]
  %s7 = inlined_call_operand.vmem [shape: f32[4,1,8], index: 7, kind: input, shape index: {}]
  %s8 = inlined_call_operand.vmem [shape: f32[4,1,8], index: 8, kind: input, shape index: {}]
  %s9 = inlined_call_operand.vmem [shape: f32[4,8,32], index: 9, kind: input, shape index: {}]
  %s10 = inlined_call_operand.vmem [shape: f32[1,32], index: 10, kind: input, shape index: {}]
  %s11 = inlined_call_operand.hbm [shape: f32[2,8,32], index: 11, kind: output, shape index: {}]
  %s12 = sld [smem:[#allocation0]]
  $region77: #{tpu_custom_call.1} parent=0
    _
  %s14 = ssub.s32 1, %s12
  %s15 = scalar_select 0, %s14, %s12
  $region1: #{tpu_custom_call.1} parent=0
    #allocation3 [shape = 'u8[8192]{0}', space=vmem, size = 0x2000, scoped, tag = 'output window, operand 0']
    #allocation4 [shape = 's32[2]{0}', space=sflag, size = 0x8, scoped, tag = 'scoped memory for tpu_custom_call.1']
    %16 = vsyncpa [#allocation4], 0
    %s17 = scalar_lea.sflag [#allocation4], 1
    %18 = vsyncpa %s17, 0
    loop: start=0, step=1, limit=4
    $region2: #{tpu_custom_call.1} parent=1 // loop_pre_header
      _
    $region3: #{tpu_custom_call.1} parent=1 // loop_header
      %s20 = sphi 0, %s24
      %p21 = scmp.ge.s32.totalorder %s20, 4
      %s30 = sphi 0, %s32
      %s33 = sphi 0, %s30
      %s34 = sphi 0, %s33
      %s50 = sphi 0, %s34
      %s56 = sphi 0, %s58
      %s59 = sphi 0, %s56
      %s60 = sphi 0, %s59
      %s76 = sphi 0, %s60
      %s82 = sphi 0, %s84
      %s85 = sphi 0, %s82
      %s86 = sphi 0, %s85
      %s102 = sphi 0, %s86
      %s106 = sphi 0, %s106
      %s108 = sphi 0, %s106
      %s109 = sphi 0, %s108
      %s123 = sphi 0, %s109
      %s127 = sphi 0, %s127
      %s129 = sphi 0, %s127
      %s130 = sphi 0, %s129
      %s144 = sphi 0, %s130
      %s148 = sphi 0, %s148
      %s150 = sphi 0, %s148
      %s151 = sphi 0, %s150
      %s165 = sphi 0, %s151
      %s169 = sphi 0, %s169
      %s171 = sphi 0, %s169
      %s172 = sphi 0, %s171
      %s186 = sphi 0, %s172
      %s190 = sphi 0, %s190
      %s192 = sphi 0, %s190
      %s193 = sphi 0, %s192
      %s207 = sphi 0, %s193
      %s211 = sphi 0, %s211
      %s213 = sphi 0, %s211
      %s214 = sphi 0, %s213
      %s228 = sphi 0, %s214
      %s232 = sphi 0, %s232
      %s234 = sphi 0, %s232
      %s235 = sphi 0, %s234
      %s249 = sphi 0, %s235
      %s253 = sphi 0, %s253
      %s255 = sphi 0, %s253
      %s256 = sphi 0, %s255
      %s270 = sphi 0, %s256
      %s276 = sphi 0, %s278
      %s279 = sphi 0, %s276
      %s280 = sphi 0, %s279
      %s296 = sphi 0, %s280
    $region4: #{tpu_custom_call.1} parent=1 // loop_header_branch
      %23 = sbr.rel (%p21) target = $region8
    $region5: #{tpu_custom_call.1} parent=1 // loop_body
      %s25 = ssub.s32 %s20, 1
      %s26 = ssub.s32 %s20, 2
      %s27 = sadd.s32 %s20, 1
      %s28 = ssub.s32 %s20, %s27
      %p29 = scmp.eq.s32.totalorder %s28, 0
      %s31 = sadd.s32 %s30, 1
      %s32 = scalar_select %p29, %s30, %s31
      %p35 = pneg %p29
      %p36 = scmp.eq.s32.totalorder %s20, 1
      %p37 = por %p35, %p36
      %p38 = scmp.ne.s32.totalorder %s30, %s33
      %p39 = scmp.eq.s32.totalorder %s20, 0
      %p40 = por %p38, %p39
      %p41 = scmp.ne.s32.totalorder %s30, %s33
      %p42 = scmp.eq.s32.totalorder %s25, 1
      %p43 = por %p41, %p42
      %p44 = scmp.ne.s32.totalorder %s33, %s34
      %p45 = scmp.eq.s32.totalorder %s25, 0
      %p46 = por %p44, %p45
      %p47 = scmp.ne.s32.totalorder %s33, %s34
      %p48 = scmp.eq.s32.totalorder %s26, 1
      %p49 = por %p47, %p48
      %p51 = scmp.ne.s32.totalorder %s34, %s50
      %p52 = scmp.eq.s32.totalorder %s26, 0
      %p53 = por %p51, %p52
      %s54 = ssub.s32 %s20, %s27
      %p55 = scmp.eq.s32.totalorder %s54, 0
      %s57 = sadd.s32 %s56, 1
      %s58 = scalar_select %p55, %s56, %s57
      %p61 = pneg %p55
      %p62 = scmp.eq.s32.totalorder %s20, 1
      %p63 = por %p61, %p62
      %p64 = scmp.ne.s32.totalorder %s56, %s59
      %p65 = scmp.eq.s32.totalorder %s20, 0
      %p66 = por %p64, %p65
      %p67 = scmp.ne.s32.totalorder %s56, %s59
      %p68 = scmp.eq.s32.totalorder %s25, 1
      %p69 = por %p67, %p68
      %p70 = scmp.ne.s32.totalorder %s59, %s60
      %p71 = scmp.eq.s32.totalorder %s25, 0
      %p72 = por %p70, %p71
      %p73 = scmp.ne.s32.totalorder %s59, %s60
      %p74 = scmp.eq.s32.totalorder %s26, 1
      %p75 = por %p73, %p74
      %p77 = scmp.ne.s32.totalorder %s60, %s76
      %p78 = scmp.eq.s32.totalorder %s26, 0
      %p79 = por %p77, %p78
      %s80 = ssub.s32 %s20, %s27
      %p81 = scmp.eq.s32.totalorder %s80, 0
      %s83 = sadd.s32 %s82, 1
      %s84 = scalar_select %p81, %s82, %s83
      %p87 = pneg %p81
      %p88 = scmp.eq.s32.totalorder %s20, 1
      %p89 = por %p87, %p88
      %p90 = scmp.ne.s32.totalorder %s82, %s85
      %p91 = scmp.eq.s32.totalorder %s20, 0
      %p92 = por %p90, %p91
      %p93 = scmp.ne.s32.totalorder %s82, %s85
      %p94 = scmp.eq.s32.totalorder %s25, 1
      %p95 = por %p93, %p94
      %p96 = scmp.ne.s32.totalorder %s85, %s86
      %p97 = scmp.eq.s32.totalorder %s25, 0
      %p98 = por %p96, %p97
      %p99 = scmp.ne.s32.totalorder %s85, %s86
      %p100 = scmp.eq.s32.totalorder %s26, 1
      %p101 = por %p99, %p100
      %p103 = scmp.ne.s32.totalorder %s86, %s102
      %p104 = scmp.eq.s32.totalorder %s26, 0
      %p105 = por %p103, %p104
      %s107 = sadd.s32 %s106, 1
      %p110 = scmp.eq.s32.totalorder %s20, 1
      %p111 = scmp.ne.s32.totalorder %s106, %s108
      %p112 = scmp.eq.s32.totalorder %s20, 0
      %p113 = por %p111, %p112
      %p114 = scmp.ne.s32.totalorder %s106, %s108
      %p115 = scmp.eq.s32.totalorder %s25, 1
      %p116 = por %p114, %p115
      %p117 = scmp.ne.s32.totalorder %s108, %s109
      %p118 = scmp.eq.s32.totalorder %s25, 0
      %p119 = por %p117, %p118
      %p120 = scmp.ne.s32.totalorder %s108, %s109
      %p121 = scmp.eq.s32.totalorder %s26, 1
      %p122 = por %p120, %p121
      %p124 = scmp.ne.s32.totalorder %s109, %s123
      %p125 = scmp.eq.s32.totalorder %s26, 0
      %p126 = por %p124, %p125
      %s128 = sadd.s32 %s127, 1
      %p131 = scmp.eq.s32.totalorder %s20, 1
      %p132 = scmp.ne.s32.totalorder %s127, %s129
      %p133 = scmp.eq.s32.totalorder %s20, 0
      %p134 = por %p132, %p133
      %p135 = scmp.ne.s32.totalorder %s127, %s129
      %p136 = scmp.eq.s32.totalorder %s25, 1
      %p137 = por %p135, %p136
      %p138 = scmp.ne.s32.totalorder %s129, %s130
      %p139 = scmp.eq.s32.totalorder %s25, 0
      %p140 = por %p138, %p139
      %p141 = scmp.ne.s32.totalorder %s129, %s130
      %p142 = scmp.eq.s32.totalorder %s26, 1
      %p143 = por %p141, %p142
      %p145 = scmp.ne.s32.totalorder %s130, %s144
      %p146 = scmp.eq.s32.totalorder %s26, 0
      %p147 = por %p145, %p146
      %s149 = sadd.s32 %s148, 1
      %p152 = scmp.eq.s32.totalorder %s20, 1
      %p153 = scmp.ne.s32.totalorder %s148, %s150
      %p154 = scmp.eq.s32.totalorder %s20, 0
      %p155 = por %p153, %p154
      %p156 = scmp.ne.s32.totalorder %s148, %s150
      %p157 = scmp.eq.s32.totalorder %s25, 1
      %p158 = por %p156, %p157
      %p159 = scmp.ne.s32.totalorder %s150, %s151
      %p160 = scmp.eq.s32.totalorder %s25, 0
      %p161 = por %p159, %p160
      %p162 = scmp.ne.s32.totalorder %s150, %s151
      %p163 = scmp.eq.s32.totalorder %s26, 1
      %p164 = por %p162, %p163
      %p166 = scmp.ne.s32.totalorder %s151, %s165
      %p167 = scmp.eq.s32.totalorder %s26, 0
      %p168 = por %p166, %p167
      %s170 = sadd.s32 %s169, 1
      %p173 = scmp.eq.s32.totalorder %s20, 1
      %p174 = scmp.ne.s32.totalorder %s169, %s171
      %p175 = scmp.eq.s32.totalorder %s20, 0
      %p176 = por %p174, %p175
      %p177 = scmp.ne.s32.totalorder %s169, %s171
      %p178 = scmp.eq.s32.totalorder %s25, 1
      %p179 = por %p177, %p178
      %p180 = scmp.ne.s32.totalorder %s171, %s172
      %p181 = scmp.eq.s32.totalorder %s25, 0
      %p182 = por %p180, %p181
      %p183 = scmp.ne.s32.totalorder %s171, %s172
      %p184 = scmp.eq.s32.totalorder %s26, 1
      %p185 = por %p183, %p184
      %p187 = scmp.ne.s32.totalorder %s172, %s186
      %p188 = scmp.eq.s32.totalorder %s26, 0
      %p189 = por %p187, %p188
      %s191 = sadd.s32 %s190, 1
      %p194 = scmp.eq.s32.totalorder %s20, 1
      %p195 = scmp.ne.s32.totalorder %s190, %s192
      %p196 = scmp.eq.s32.totalorder %s20, 0
      %p197 = por %p195, %p196
      %p198 = scmp.ne.s32.totalorder %s190, %s192
      %p199 = scmp.eq.s32.totalorder %s25, 1
      %p200 = por %p198, %p199
      %p201 = scmp.ne.s32.totalorder %s192, %s193
      %p202 = scmp.eq.s32.totalorder %s25, 0
      %p203 = por %p201, %p202
      %p204 = scmp.ne.s32.totalorder %s192, %s193
      %p205 = scmp.eq.s32.totalorder %s26, 1
      %p206 = por %p204, %p205
      %p208 = scmp.ne.s32.totalorder %s193, %s207
      %p209 = scmp.eq.s32.totalorder %s26, 0
      %p210 = por %p208, %p209
      %s212 = sadd.s32 %s211, 1
      %p215 = scmp.eq.s32.totalorder %s20, 1
      %p216 = scmp.ne.s32.totalorder %s211, %s213
      %p217 = scmp.eq.s32.totalorder %s20, 0
      %p218 = por %p216, %p217
      %p219 = scmp.ne.s32.totalorder %s211, %s213
      %p220 = scmp.eq.s32.totalorder %s25, 1
      %p221 = por %p219, %p220
      %p222 = scmp.ne.s32.totalorder %s213, %s214
      %p223 = scmp.eq.s32.totalorder %s25, 0
      %p224 = por %p222, %p223
      %p225 = scmp.ne.s32.totalorder %s213, %s214
      %p226 = scmp.eq.s32.totalorder %s26, 1
      %p227 = por %p225, %p226
      %p229 = scmp.ne.s32.totalorder %s214, %s228
      %p230 = scmp.eq.s32.totalorder %s26, 0
      %p231 = por %p229, %p230
      %s233 = sadd.s32 %s232, 1
      %p236 = scmp.eq.s32.totalorder %s20, 1
      %p237 = scmp.ne.s32.totalorder %s232, %s234
      %p238 = scmp.eq.s32.totalorder %s20, 0
      %p239 = por %p237, %p238
      %p240 = scmp.ne.s32.totalorder %s232, %s234
      %p241 = scmp.eq.s32.totalorder %s25, 1
      %p242 = por %p240, %p241
      %p243 = scmp.ne.s32.totalorder %s234, %s235
      %p244 = scmp.eq.s32.totalorder %s25, 0
      %p245 = por %p243, %p244
      %p246 = scmp.ne.s32.totalorder %s234, %s235
      %p247 = scmp.eq.s32.totalorder %s26, 1
      %p248 = por %p246, %p247
      %p250 = scmp.ne.s32.totalorder %s235, %s249
      %p251 = scmp.eq.s32.totalorder %s26, 0
      %p252 = por %p250, %p251
      %s254 = sadd.s32 %s253, 1
      %p257 = scmp.eq.s32.totalorder %s20, 1
      %p258 = scmp.ne.s32.totalorder %s253, %s255
      %p259 = scmp.eq.s32.totalorder %s20, 0
      %p260 = por %p258, %p259
      %p261 = scmp.ne.s32.totalorder %s253, %s255
      %p262 = scmp.eq.s32.totalorder %s25, 1
      %p263 = por %p261, %p262
      %p264 = scmp.ne.s32.totalorder %s255, %s256
      %p265 = scmp.eq.s32.totalorder %s25, 0
      %p266 = por %p264, %p265
      %p267 = scmp.ne.s32.totalorder %s255, %s256
      %p268 = scmp.eq.s32.totalorder %s26, 1
      %p269 = por %p267, %p268
      %p271 = scmp.ne.s32.totalorder %s256, %s270
      %p272 = scmp.eq.s32.totalorder %s26, 0
      %p273 = por %p271, %p272
      %s274 = ssub.s32 %s20, %s27
      %p275 = scmp.eq.s32.totalorder %s274, 0
      %s277 = sadd.s32 %s276, 1
      %s278 = scalar_select %p275, %s276, %s277
      %p281 = pneg %p275
      %p282 = scmp.eq.s32.totalorder %s20, 1
      %p283 = por %p281, %p282
      %p284 = scmp.ne.s32.totalorder %s276, %s279
      %p285 = scmp.eq.s32.totalorder %s20, 0
      %p286 = por %p284, %p285
      %p287 = scmp.ne.s32.totalorder %s276, %s279
      %p288 = scmp.eq.s32.totalorder %s25, 1
      %p289 = por %p287, %p288
      %p290 = scmp.ne.s32.totalorder %s279, %s280
      %p291 = scmp.eq.s32.totalorder %s25, 0
      %p292 = por %p290, %p291
      %p293 = scmp.ne.s32.totalorder %s279, %s280
      %p294 = scmp.eq.s32.totalorder %s26, 1
      %p295 = por %p293, %p294
      %p297 = scmp.ne.s32.totalorder %s280, %s296
      %p298 = scmp.eq.s32.totalorder %s26, 0
      %p299 = por %p297, %p298
      %p300 = scmp.le.s32.totalorder 1, %s20
      %p301 = scmp.lt.s32.totalorder %s20, 3
      %p302 = pnand %p300, %p301
      %p303 = pneg %p302
      // Predicated region
      $region9: #{tpu_custom_call.1} parent=5 // pred_check
        _
      $region10: #{tpu_custom_call.1} parent=5 // pred_check_branch
        %305 = sbr.rel (%p302) target = $region12
      $region11: #{tpu_custom_call.1} parent=5 // pred_region
        %s306 = ssub.s32 %s20, 1
        // Predicated region
        $region13: #{tpu_custom_call.1} parent=11 // pred_check
          %p307 = pneg %p119
        $region14: #{tpu_custom_call.1} parent=11 // pred_check_branch
          %309 = sbr.rel (%p307) target = $region16
        $region15: #{tpu_custom_call.1} parent=11 // pred_region
          _
        $region16: #{tpu_custom_call.1} parent=11 // pred_fallthru
          _
        // Predicated region
        $region17: #{tpu_custom_call.1} parent=11 // pred_check
          %p310 = pneg %p140
        $region18: #{tpu_custom_call.1} parent=11 // pred_check_branch
          %312 = sbr.rel (%p310) target = $region20
        $region19: #{tpu_custom_call.1} parent=11 // pred_region
          _
        $region20: #{tpu_custom_call.1} parent=11 // pred_fallthru
          _
        // Predicated region
        $region21: #{tpu_custom_call.1} parent=11 // pred_check
          %p313 = pneg %p161
        $region22: #{tpu_custom_call.1} parent=11 // pred_check_branch
          %315 = sbr.rel (%p313) target = $region24
        $region23: #{tpu_custom_call.1} parent=11 // pred_region
          _
        $region24: #{tpu_custom_call.1} parent=11 // pred_fallthru
          _
        // Predicated region
        $region25: #{tpu_custom_call.1} parent=11 // pred_check
          %p316 = pneg %p182
        $region26: #{tpu_custom_call.1} parent=11 // pred_check_branch
          %318 = sbr.rel (%p316) target = $region28
        $region27: #{tpu_custom_call.1} parent=11 // pred_region
          _
        $region28: #{tpu_custom_call.1} parent=11 // pred_fallthru
          _
        // Predicated region
        $region29: #{tpu_custom_call.1} parent=11 // pred_check
          %p319 = pneg %p203
        $region30: #{tpu_custom_call.1} parent=11 // pred_check_branch
          %321 = sbr.rel (%p319) target = $region32
        $region31: #{tpu_custom_call.1} parent=11 // pred_region
          _
        $region32: #{tpu_custom_call.1} parent=11 // pred_fallthru
          _
        // Predicated region
        $region33: #{tpu_custom_call.1} parent=11 // pred_check
          %p322 = pneg %p224
        $region34: #{tpu_custom_call.1} parent=11 // pred_check_branch
          %324 = sbr.rel (%p322) target = $region36
        $region35: #{tpu_custom_call.1} parent=11 // pred_region
          _
        $region36: #{tpu_custom_call.1} parent=11 // pred_fallthru
          _
        // Predicated region
        $region37: #{tpu_custom_call.1} parent=11 // pred_check
          %p325 = pneg %p245
        $region38: #{tpu_custom_call.1} parent=11 // pred_check_branch
          %327 = sbr.rel (%p325) target = $region40
        $region39: #{tpu_custom_call.1} parent=11 // pred_region
          _
        $region40: #{tpu_custom_call.1} parent=11 // pred_fallthru
          _
        // Predicated region
        $region41: #{tpu_custom_call.1} parent=11 // pred_check
          %p328 = pneg %p266
        $region42: #{tpu_custom_call.1} parent=11 // pred_check_branch
          %330 = sbr.rel (%p328) target = $region44
        $region43: #{tpu_custom_call.1} parent=11 // pred_region
          _
        $region44: #{tpu_custom_call.1} parent=11 // pred_fallthru
          _
      $region12: #{tpu_custom_call.1} parent=5 // pred_fallthru
        _
      %p331 = scmp.lt.s32.totalorder %s20, 2
      // Predicated region
      $region45: #{tpu_custom_call.1} parent=5 // pred_check
        %p332 = pneg %p331
      $region46: #{tpu_custom_call.1} parent=5 // pred_check_branch
        %334 = sbr.rel (%p332) target = $region48
      $region47: #{tpu_custom_call.1} parent=5 // pred_region
        // Predicated region
        $region49: #{tpu_custom_call.1} parent=47 // pred_check
          %p335 = pneg %p40
        $region50: #{tpu_custom_call.1} parent=47 // pred_check_branch
          %337 = sbr.rel (%p335) target = $region52
        $region51: #{tpu_custom_call.1} parent=47 // pred_region
          %p338 = scmp.lt.s32.totalorder %s20, 1
          %s339 = scalar_select %p338, %s20, 1
          %s340 = smul.addr %s339, 8
          %s341 = scalar_lea.vmem %s0, %s340
        $region52: #{tpu_custom_call.1} parent=47 // pred_fallthru
          _
        // Predicated region
        $region53: #{tpu_custom_call.1} parent=47 // pred_check
          %p342 = pneg %p66
        $region54: #{tpu_custom_call.1} parent=47 // pred_check_branch
          %344 = sbr.rel (%p342) target = $region56
        $region55: #{tpu_custom_call.1} parent=47 // pred_region
          %p345 = scmp.lt.s32.totalorder %s20, 1
          %s346 = scalar_select %p345, %s20, 1
          %s347 = smul.addr %s346, 8
          %s348 = scalar_lea.vmem %s1, %s347
        $region56: #{tpu_custom_call.1} parent=47 // pred_fallthru
          _
        // Predicated region
        $region57: #{tpu_custom_call.1} parent=47 // pred_check
          %p349 = pneg %p92
        $region58: #{tpu_custom_call.1} parent=47 // pred_check_branch
          %351 = sbr.rel (%p349) target = $region60
        $region59: #{tpu_custom_call.1} parent=47 // pred_region
          %p352 = scmp.lt.s32.totalorder %s20, 1
          %s353 = scalar_select %p352, %s20, 1
          %s354 = smul.addr %s353, 8
          %s355 = scalar_lea.vmem %s2, %s354
        $region60: #{tpu_custom_call.1} parent=47 // pred_fallthru
          _
      $region48: #{tpu_custom_call.1} parent=5 // pred_fallthru
        _
      %p356 = scmp.le.s32.totalorder 1, %s20
      %p357 = scmp.lt.s32.totalorder %s20, 3
      %p358 = pnand %p356, %p357
      %p359 = pneg %p358
      // Predicated region
      $region61: #{tpu_custom_call.1} parent=5 // pred_check
        _
      $region62: #{tpu_custom_call.1} parent=5 // pred_check_branch
        %361 = sbr.rel (%p358) target = $region64
      $region63: #{tpu_custom_call.1} parent=5 // pred_region
        %s362 = ssub.s32 %s20, 1
        %p363 = scmp.lt.s32.totalorder %s25, 1
        %s364 = scalar_select %p363, %s25, 1
        %s365 = smul.addr %s364, 8
        %s366 = scalar_lea.vmem %s0, %s365
        %p367 = pneg %p46
        %p368 = pneg %p43
        %p369 = scmp.lt.s32.totalorder %s25, 1
        %s370 = scalar_select %p369, %s25, 1
        %s371 = smul.addr %s370, 8
        %s372 = scalar_lea.vmem %s1, %s371
        %p373 = pneg %p72
        %p374 = pneg %p69
        %p375 = scmp.lt.s32.totalorder %s25, 1
        %s376 = scalar_select %p375, %s25, 1
        %s377 = smul.addr %s376, 8
        %s378 = scalar_lea.vmem %s2, %s377
        %p379 = pneg %p98
        %p380 = pneg %p95
        %p381 = pneg %p119
        %p382 = pneg %p116
        %p383 = pneg %p140
        %p384 = pneg %p137
        %p385 = pneg %p161
        %p386 = pneg %p158
        %p387 = pneg %p182
        %p388 = pneg %p179
        %p389 = pneg %p203
        %p390 = pneg %p200
        %p391 = pneg %p224
        %p392 = pneg %p221
        %p393 = pneg %p245
        %p394 = pneg %p242
        %p395 = pneg %p266
        %p396 = pneg %p263
        %p397 = pneg %p292
        %p398 = pneg %p289
        %s399 = sand.u32 %s279, 1
        %s400 = scalar_lea.sflag [#allocation4], %s399
        %s401 = sand.u32 %s279, 1
        %s402 = smul.addr %s401, 8
        %s403 = scalar_lea.vmem [#allocation3], %s402
        %p404 = scmp.lt.s32.totalorder %s25, 1
        %s405 = scalar_select %p404, %s25, 1
        %s406 = smul.addr %s405, 8
        %s407 = scalar_lea.vmem %s0, %s406
        %p408 = scmp.lt.s32.totalorder %s25, 1
        %s409 = scalar_select %p408, %s25, 1
        %s410 = smul.addr %s409, 8
        %s411 = scalar_lea.vmem %s1, %s410
        %p412 = scmp.lt.s32.totalorder %s25, 1
        %s413 = scalar_select %p412, %s25, 1
        %s414 = smul.addr %s413, 8
        %s415 = scalar_lea.vmem %s2, %s414
        %v416 = vld [vmem:[%s407] sm:$0xff]
        %v417 = vld [vmem:[%s411] sm:$0xff]
        %v418 = vld [vmem:[%s415] sm:$0xff]
        %v419 = vld [vmem:[%s3] sm:$0xff]
        %v420 = vld [vmem:[%s3 + $0x8] sm:$0xff]
        %v421 = vld [vmem:[%s3 + $0x10] sm:$0xff]
        %v422 = vld [vmem:[%s3 + $0x18] sm:$0xff]
        %v423 = vld [vmem:[%s6] sm:$0x1]
        %v425 = vlaneseq
        %v426 = vshrl.u32 %v425, 7
        %v427 = vsub.s32 0, %v426
        %v428 = vrot.slane %v423, %v427
        %vm430 = vcmask 261120
        %v432 = vsel %vm430, %v416, 0
        %434 = vmatprep.subr.mxu0 0.0
        %435 = vmatpush1.msra.mxu0 %v419
        %436 = vmatprep.subr.mxu0 0.0
        %437 = vmatpush1.msra.mxu0 %v420
        %438 = vmatprep.subr.mxu0 0.0
        %439 = vmatpush1.msra.mxu0 %v421
        %440 = vmatprep.subr.mxu0 0.0
        %441 = vmatpush1.msra.mxu0 %v422
        %442 = vmatprep.subr.mxu0 0.0
        %443 = vmatpush1.msra.mxu0 0.0
        %444 = vmatprep.subr.mxu0 0.0
        %445 = vmatpush1.msra.mxu0 0.0
        %446 = vmatprep.subr.mxu0 0.0
        %447 = vmatpush1.msra.mxu0 0.0
        %448 = vmatprep.subr.mxu0 0.0
        %449 = vmatpush1.msra.mxu0 0.0
        %450 = vmatprep.subr.mxu0 0.0
        %451 = vmatpush1.msra.mxu0 0.0
        %452 = vmatprep.subr.mxu0 0.0
        %453 = vmatpush1.msra.mxu0 0.0
        %454 = vmatprep.subr.mxu0 0.0
        %455 = vmatpush1.msra.mxu0 0.0
        %456 = vmatprep.subr.mxu0 0.0
        %457 = vmatpush1.msra.mxu0 0.0
        %458 = vmatprep.subr.mxu0 0.0
        %459 = vmatpush1.msra.mxu0 0.0
        %460 = vmatprep.subr.mxu0 0.0
        %461 = vmatpush1.msra.mxu0 0.0
        %462 = vmatprep.subr.mxu0 0.0
        %463 = vmatpush1.msra.mxu0 0.0
        %464 = vmatprep.subr.mxu0 0.0
        %465 = vmatpush1.msra.mxu0 0.0
        %466 = vmatprep.subr.mxu0 0.0
        %467 = vmatpush1.msra.mxu0 0.0
        %468 = vmatprep.subr.mxu0 0.0
        %469 = vmatpush1.msra.mxu0 0.0
        %470 = vmatprep.subr.mxu0 0.0
        %471 = vmatpush1.msra.mxu0 0.0
        %472 = vmatprep.subr.mxu0 0.0
        %473 = vmatpush1.msra.mxu0 0.0
        %474 = vmatprep.subr.mxu0 0.0
        %475 = vmatpush1.msra.mxu0 0.0
        %476 = vmatprep.subr.mxu0 0.0
        %477 = vmatpush1.msra.mxu0 0.0
        %478 = vmatprep.subr.mxu0 0.0
        %479 = vmatpush1.msra.mxu0 0.0
        %480 = vmatprep.subr.mxu0 0.0
        %481 = vmatpush1.msra.mxu0 0.0
        %482 = vmatprep.subr.mxu0 0.0
        %483 = vmatpush1.msra.mxu0 0.0
        %484 = vmatprep.subr.mxu0 0.0
        %485 = vmatpush1.msra.mxu0 0.0
        %486 = vmatprep.subr.mxu0 0.0
        %487 = vmatpush1.msra.mxu0 0.0
        %488 = vmatprep.subr.mxu0 0.0
        %489 = vmatpush1.msra.mxu0 0.0
        %490 = vmatprep.subr.mxu0 0.0
        %491 = vmatpush1.msra.mxu0 0.0
        %492 = vmatprep.subr.mxu0 0.0
        %493 = vmatpush1.msra.mxu0 0.0
        %494 = vmatprep.subr.mxu0 0.0
        %495 = vmatpush1.msra.mxu0 0.0
        %496 = vmatprep.subr.mxu0 0.0
        %497 = vmatpush1.msra.mxu0 0.0
        %498 = vmatprep.mubr.f32.mxu0 0.0
        %499 = vmatmul.mubr.f32.gmra.mrb[0].mxu0 %v432
        %v500 = vpop.f32.mrb[0].mxu0
        %v501 = vadd.f32 %v428, %v500
        %v502 = vpop.f32.mrb[0].mxu0
        %503 = vdwg.mxu0
        %v504 = vmul.f32 %v501, 0.35355338
        %v505 = vld [vmem:[%s4] sm:$0xff]
        %v506 = vld [vmem:[%s4 + $0x8] sm:$0xff]
        %v507 = vld [vmem:[%s4 + $0x10] sm:$0xff]
        %v508 = vld [vmem:[%s4 + $0x18] sm:$0xff]
        %v509 = vld [vmem:[%s7] sm:$0x1]
        %v511 = vlaneseq
        %v512 = vshrl.u32 %v511, 7
        %v513 = vsub.s32 0, %v512
        %v514 = vrot.slane %v509, %v513
        %v517 = vsel %vm430, %v417, 0
        %519 = vmatprep.subr.mxu0 0.0
        %520 = vmatpush1.msra.mxu0 %v505
        %521 = vmatprep.subr.mxu0 0.0
        %522 = vmatpush1.msra.mxu0 %v506
        %523 = vmatprep.subr.mxu0 0.0
        %524 = vmatpush1.msra.mxu0 %v507
        %525 = vmatprep.subr.mxu0 0.0
        %526 = vmatpush1.msra.mxu0 %v508
        %527 = vmatprep.subr.mxu0 0.0
        %528 = vmatpush1.msra.mxu0 0.0
        %529 = vmatprep.subr.mxu0 0.0
        %530 = vmatpush1.msra.mxu0 0.0
        %531 = vmatprep.subr.mxu0 0.0
        %532 = vmatpush1.msra.mxu0 0.0
        %533 = vmatprep.subr.mxu0 0.0
        %534 = vmatpush1.msra.mxu0 0.0
        %535 = vmatprep.subr.mxu0 0.0
        %536 = vmatpush1.msra.mxu0 0.0
        %537 = vmatprep.subr.mxu0 0.0
        %538 = vmatpush1.msra.mxu0 0.0
        %539 = vmatprep.subr.mxu0 0.0
        %540 = vmatpush1.msra.mxu0 0.0
        %541 = vmatprep.subr.mxu0 0.0
        %542 = vmatpush1.msra.mxu0 0.0
        %543 = vmatprep.subr.mxu0 0.0
        %544 = vmatpush1.msra.mxu0 0.0
        %545 = vmatprep.subr.mxu0 0.0
        %546 = vmatpush1.msra.mxu0 0.0
        %547 = vmatprep.subr.mxu0 0.0
        %548 = vmatpush1.msra.mxu0 0.0
        %549 = vmatprep.subr.mxu0 0.0
        %550 = vmatpush1.msra.mxu0 0.0
        %551 = vmatprep.subr.mxu0 0.0
        %552 = vmatpush1.msra.mxu0 0.0
        %553 = vmatprep.subr.mxu0 0.0
        %554 = vmatpush1.msra.mxu0 0.0
        %555 = vmatprep.subr.mxu0 0.0
        %556 = vmatpush1.msra.mxu0 0.0
        %557 = vmatprep.subr.mxu0 0.0
        %558 = vmatpush1.msra.mxu0 0.0
        %559 = vmatprep.subr.mxu0 0.0
        %560 = vmatpush1.msra.mxu0 0.0
        %561 = vmatprep.subr.mxu0 0.0
        %562 = vmatpush1.msra.mxu0 0.0
        %563 = vmatprep.subr.mxu0 0.0
        %564 = vmatpush1.msra.mxu0 0.0
        %565 = vmatprep.subr.mxu0 0.0
        %566 = vmatpush1.msra.mxu0 0.0
        %567 = vmatprep.subr.mxu0 0.0
        %568 = vmatpush1.msra.mxu0 0.0
        %569 = vmatprep.subr.mxu0 0.0
        %570 = vmatpush1.msra.mxu0 0.0
        %571 = vmatprep.subr.mxu0 0.0
        %572 = vmatpush1.msra.mxu0 0.0
        %573 = vmatprep.subr.mxu0 0.0
        %574 = vmatpush1.msra.mxu0 0.0
        %575 = vmatprep.subr.mxu0 0.0
        %576 = vmatpush1.msra.mxu0 0.0
        %577 = vmatprep.subr.mxu0 0.0
        %578 = vmatpush1.msra.mxu0 0.0
        %579 = vmatprep.subr.mxu0 0.0
        %580 = vmatpush1.msra.mxu0 0.0
        %581 = vmatprep.subr.mxu0 0.0
        %582 = vmatpush1.msra.mxu0 0.0
        %583 = vmatprep.mubr.f32.mxu0 0.0
        %584 = vmatmul.mubr.f32.gmra.mrb[0].mxu0 %v517
        %v585 = vpop.f32.mrb[0].mxu0
        %v586 = vadd.f32 %v514, %v585
        %v587 = vpop.f32.mrb[0].mxu0
        %588 = vdwg.mxu0
        %v589 = vld [vmem:[%s5] sm:$0xff]
        %v590 = vld [vmem:[%s5 + $0x8] sm:$0xff]
        %v591 = vld [vmem:[%s5 + $0x10] sm:$0xff]
        %v592 = vld [vmem:[%s5 + $0x18] sm:$0xff]
        %v593 = vld [vmem:[%s8] sm:$0x1]
        %v595 = vlaneseq
        %v596 = vshrl.u32 %v595, 7
        %v597 = vsub.s32 0, %v596
        %v598 = vrot.slane %v593, %v597
        %v601 = vsel %vm430, %v418, 0
        %603 = vmatprep.subr.mxu0 0.0
        %604 = vmatpush1.msra.mxu0 %v589
        %605 = vmatprep.subr.mxu0 0.0
        %606 = vmatpush1.msra.mxu0 %v590
        %607 = vmatprep.subr.mxu0 0.0
        %608 = vmatpush1.msra.mxu0 %v591
        %609 = vmatprep.subr.mxu0 0.0
        %610 = vmatpush1.msra.mxu0 %v592
        %611 = vmatprep.subr.mxu0 0.0
        %612 = vmatpush1.msra.mxu0 0.0
        %613 = vmatprep.subr.mxu0 0.0
        %614 = vmatpush1.msra.mxu0 0.0
        %615 = vmatprep.subr.mxu0 0.0
        %616 = vmatpush1.msra.mxu0 0.0
        %617 = vmatprep.subr.mxu0 0.0
        %618 = vmatpush1.msra.mxu0 0.0
        %619 = vmatprep.subr.mxu0 0.0
        %620 = vmatpush1.msra.mxu0 0.0
        %621 = vmatprep.subr.mxu0 0.0
        %622 = vmatpush1.msra.mxu0 0.0
        %623 = vmatprep.subr.mxu0 0.0
        %624 = vmatpush1.msra.mxu0 0.0
        %625 = vmatprep.subr.mxu0 0.0
        %626 = vmatpush1.msra.mxu0 0.0
        %627 = vmatprep.subr.mxu0 0.0
        %628 = vmatpush1.msra.mxu0 0.0
        %629 = vmatprep.subr.mxu0 0.0
        %630 = vmatpush1.msra.mxu0 0.0
        %631 = vmatprep.subr.mxu0 0.0
        %632 = vmatpush1.msra.mxu0 0.0
        %633 = vmatprep.subr.mxu0 0.0
        %634 = vmatpush1.msra.mxu0 0.0
        %635 = vmatprep.subr.mxu0 0.0
        %636 = vmatpush1.msra.mxu0 0.0
        %637 = vmatprep.subr.mxu0 0.0
        %638 = vmatpush1.msra.mxu0 0.0
        %639 = vmatprep.subr.mxu0 0.0
        %640 = vmatpush1.msra.mxu0 0.0
        %641 = vmatprep.subr.mxu0 0.0
        %642 = vmatpush1.msra.mxu0 0.0
        %643 = vmatprep.subr.mxu0 0.0
        %644 = vmatpush1.msra.mxu0 0.0
        %645 = vmatprep.subr.mxu0 0.0
        %646 = vmatpush1.msra.mxu0 0.0
        %647 = vmatprep.subr.mxu0 0.0
        %648 = vmatpush1.msra.mxu0 0.0
        %649 = vmatprep.subr.mxu0 0.0
        %650 = vmatpush1.msra.mxu0 0.0
        %651 = vmatprep.subr.mxu0 0.0
        %652 = vmatpush1.msra.mxu0 0.0
        %653 = vmatprep.subr.mxu0 0.0
        %654 = vmatpush1.msra.mxu0 0.0
        %655 = vmatprep.subr.mxu0 0.0
        %656 = vmatpush1.msra.mxu0 0.0
        %657 = vmatprep.subr.mxu0 0.0
        %658 = vmatpush1.msra.mxu0 0.0
        %659 = vmatprep.subr.mxu0 0.0
        %660 = vmatpush1.msra.mxu0 0.0
        %661 = vmatprep.subr.mxu0 0.0
        %662 = vmatpush1.msra.mxu0 0.0
        %663 = vmatprep.subr.mxu0 0.0
        %664 = vmatpush1.msra.mxu0 0.0
        %665 = vmatprep.subr.mxu0 0.0
        %666 = vmatpush1.msra.mxu0 0.0
        %667 = vmatprep.mubr.f32.mxu0 0.0
        %668 = vmatmul.mubr.f32.gmra.mrb[0].mxu0 %v601
        %v669 = vpop.f32.mrb[0].mxu0
        %v670 = vadd.f32 %v598, %v669
        %v671 = vpop.f32.mrb[0].mxu0
        %672 = vdwg.mxu0
        %vm673 = vcmask 64512
        %v675 = vsel %vm673, %v504, 0
        %v678 = vsel %vm673, %v586, 0
        %680 = vmatprep.subr.mxu0 0.0
        %681 = vmatpush1.xpose.msra.mxu0 %v678
        %682 = vmatprep.subr.mxu0 0.0
        %683 = vmatpush1.xpose.msra.mxu0 0.0
        %684 = vmatprep.subr.mxu0 0.0
        %685 = vmatpush1.xpose.msra.mxu0 0.0
        %686 = vmatprep.subr.mxu0 0.0
        %687 = vmatpush1.xpose.msra.mxu0 0.0
        %688 = vmatprep.subr.mxu0 0.0
        %689 = vmatpush1.xpose.msra.mxu0 0.0
        %690 = vmatprep.subr.mxu0 0.0
        %691 = vmatpush1.xpose.msra.mxu0 0.0
        %692 = vmatprep.subr.mxu0 0.0
        %693 = vmatpush1.xpose.msra.mxu0 0.0
        %694 = vmatprep.subr.mxu0 0.0
        %695 = vmatpush1.xpose.msra.mxu0 0.0
        %696 = vmatprep.subr.mxu0 0.0
        %697 = vmatpush1.xpose.msra.mxu0 0.0
        %698 = vmatprep.subr.mxu0 0.0
        %699 = vmatpush1.xpose.msra.mxu0 0.0
        %700 = vmatprep.subr.mxu0 0.0
        %701 = vmatpush1.xpose.msra.mxu0 0.0
        %702 = vmatprep.subr.mxu0 0.0
        %703 = vmatpush1.xpose.msra.mxu0 0.0
        %704 = vmatprep.subr.mxu0 0.0
        %705 = vmatpush1.xpose.msra.mxu0 0.0
        %706 = vmatprep.subr.mxu0 0.0
        %707 = vmatpush1.xpose.msra.mxu0 0.0
        %708 = vmatprep.subr.mxu0 0.0
        %709 = vmatpush1.xpose.msra.mxu0 0.0
        %710 = vmatprep.subr.mxu0 0.0
        %711 = vmatpush1.xpose.msra.mxu0 0.0
        %712 = vmatprep.subr.mxu0 0.0
        %713 = vmatpush1.xpose.msra.mxu0 0.0
        %714 = vmatprep.subr.mxu0 0.0
        %715 = vmatpush1.xpose.msra.mxu0 0.0
        %716 = vmatprep.subr.mxu0 0.0
        %717 = vmatpush1.xpose.msra.mxu0 0.0
        %718 = vmatprep.subr.mxu0 0.0
        %719 = vmatpush1.xpose.msra.mxu0 0.0
        %720 = vmatprep.subr.mxu0 0.0
        %721 = vmatpush1.xpose.msra.mxu0 0.0
        %722 = vmatprep.subr.mxu0 0.0
        %723 = vmatpush1.xpose.msra.mxu0 0.0
        %724 = vmatprep.subr.mxu0 0.0
        %725 = vmatpush1.xpose.msra.mxu0 0.0
        %726 = vmatprep.subr.mxu0 0.0
        %727 = vmatpush1.xpose.msra.mxu0 0.0
        %728 = vmatprep.subr.mxu0 0.0
        %729 = vmatpush1.xpose.msra.mxu0 0.0
        %730 = vmatprep.subr.mxu0 0.0
        %731 = vmatpush1.xpose.msra.mxu0 0.0
        %732 = vmatprep.subr.mxu0 0.0
        %733 = vmatpush1.xpose.msra.mxu0 0.0
        %734 = vmatprep.subr.mxu0 0.0
        %735 = vmatpush1.xpose.msra.mxu0 0.0
        %736 = vmatprep.subr.mxu0 0.0
        %737 = vmatpush1.xpose.msra.mxu0 0.0
        %738 = vmatprep.subr.mxu0 0.0
        %739 = vmatpush1.xpose.msra.mxu0 0.0
        %740 = vmatprep.subr.mxu0 0.0
        %741 = vmatpush1.xpose.msra.mxu0 0.0
        %742 = vmatprep.subr.mxu0 0.0
        %743 = vmatpush1.xpose.msra.mxu0 0.0
        %744 = vmatprep.mubr.f32.mxu0 0.0
        %745 = vmatmul.mubr.f32.gmra.mrb[0].mxu0 %v675
        %v746 = vpop.f32.mrb[0].mxu0
        %v747 = vadd.f32 0.0, %v746
        %v748 = vpop.f32.mrb[0].mxu0
        %749 = vdwg.mxu0
        %v750 = vsel %vm673, %v747, -inf
        %751 = vmax.xlane.f32.xlu0 %v750
        %v752 = vpop.xlane.xlu0 %751
        %v753 = vsub.f32 %v747, %v752
        %v754 = vmul.f32 %v753, 1.442695
        %v755 = vpow.pop %v754
        %v756 = vsel %vm673, %v755, 0.0
        %757 = vadd.xlane.f32.xlu0 %v756
        %v758 = vpop.xlane.xlu0 %757
        %v759 = vrcp.pop %v758
        %v760 = vmul.f32 %v755, %v759
        %v762 = vsel %vm673, %v760, 0
        %764 = vmatprep.subr.mxu0 0.0
        %765 = vmatpush1.msra.mxu0 %v670
        %766 = vmatprep.subr.mxu0 0.0
        %767 = vmatpush1.msra.mxu0 0.0
        %768 = vmatprep.subr.mxu0 0.0
        %769 = vmatpush1.msra.mxu0 0.0
        %770 = vmatprep.subr.mxu0 0.0
        %771 = vmatpush1.msra.mxu0 0.0
        %772 = vmatprep.subr.mxu0 0.0
        %773 = vmatpush1.msra.mxu0 0.0
        %774 = vmatprep.subr.mxu0 0.0
        %775 = vmatpush1.msra.mxu0 0.0
        %776 = vmatprep.subr.mxu0 0.0
        %777 = vmatpush1.msra.mxu0 0.0
        %778 = vmatprep.subr.mxu0 0.0
        %779 = vmatpush1.msra.mxu0 0.0
        %780 = vmatprep.subr.mxu0 0.0
        %781 = vmatpush1.msra.mxu0 0.0
        %782 = vmatprep.subr.mxu0 0.0
        %783 = vmatpush1.msra.mxu0 0.0
        %784 = vmatprep.subr.mxu0 0.0
        %785 = vmatpush1.msra.mxu0 0.0
        %786 = vmatprep.subr.mxu0 0.0
        %787 = vmatpush1.msra.mxu0 0.0
        %788 = vmatprep.subr.mxu0 0.0
        %789 = vmatpush1.msra.mxu0 0.0
        %790 = vmatprep.subr.mxu0 0.0
        %791 = vmatpush1.msra.mxu0 0.0
        %792 = vmatprep.subr.mxu0 0.0
        %793 = vmatpush1.msra.mxu0 0.0
        %794 = vmatprep.subr.mxu0 0.0
        %795 = vmatpush1.msra.mxu0 0.0
        %796 = vmatprep.subr.mxu0 0.0
        %797 = vmatpush1.msra.mxu0 0.0
        %798 = vmatprep.subr.mxu0 0.0
        %799 = vmatpush1.msra.mxu0 0.0
        %800 = vmatprep.subr.mxu0 0.0
        %801 = vmatpush1.msra.mxu0 0.0
        %802 = vmatprep.subr.mxu0 0.0
        %803 = vmatpush1.msra.mxu0 0.0
        %804 = vmatprep.subr.mxu0 0.0
        %805 = vmatpush1.msra.mxu0 0.0
        %806 = vmatprep.subr.mxu0 0.0
        %807 = vmatpush1.msra.mxu0 0.0
        %808 = vmatprep.subr.mxu0 0.0
        %809 = vmatpush1.msra.mxu0 0.0
        %810 = vmatprep.subr.mxu0 0.0
        %811 = vmatpush1.msra.mxu0 0.0
        %812 = vmatprep.subr.mxu0 0.0
        %813 = vmatpush1.msra.mxu0 0.0
        %814 = vmatprep.subr.mxu0 0.0
        %815 = vmatpush1.msra.mxu0 0.0
        %816 = vmatprep.subr.mxu0 0.0
        %817 = vmatpush1.msra.mxu0 0.0
        %818 = vmatprep.subr.mxu0 0.0
        %819 = vmatpush1.msra.mxu0 0.0
        %820 = vmatprep.subr.mxu0 0.0
        %821 = vmatpush1.msra.mxu0 0.0
        %822 = vmatprep.subr.mxu0 0.0
        %823 = vmatpush1.msra.mxu0 0.0
        %824 = vmatprep.subr.mxu0 0.0
        %825 = vmatpush1.msra.mxu0 0.0
        %826 = vmatprep.subr.mxu0 0.0
        %827 = vmatpush1.msra.mxu0 0.0
        %828 = vmatprep.mubr.f32.mxu0 0.0
        %829 = vmatmul.mubr.f32.gmra.mrb[0].mxu0 %v762
        %v830 = vpop.f32.mrb[0].mxu0
        %v831 = vadd.f32 0.0, %v830
        %v832 = vpop.f32.mrb[0].mxu0
        %833 = vdwg.mxu0
        %834 = vst.msk [vmem:[#allocation2] sm:$0xff] %vm673, %v831
        %s835 = scalar_lea.vmem %s3, 32
        %v836 = vld [vmem:[%s835] sm:$0xff]
        %v837 = vld [vmem:[%s835 + $0x8] sm:$0xff]
        %v838 = vld [vmem:[%s835 + $0x10] sm:$0xff]
        %v839 = vld [vmem:[%s835 + $0x18] sm:$0xff]
        %s840 = scalar_lea.vmem %s6, 1
        %v841 = vld [vmem:[%s840] sm:$0x1]
        %v843 = vlaneseq
        %v844 = vshrl.u32 %v843, 7
        %v845 = vsub.s32 0, %v844
        %v846 = vrot.slane %v841, %v845
        %848 = vmatprep.subr.mxu0 0.0
        %849 = vmatpush1.msra.mxu0 %v836
        %850 = vmatprep.subr.mxu0 0.0
        %851 = vmatpush1.msra.mxu0 %v837
        %852 = vmatprep.subr.mxu0 0.0
        %853 = vmatpush1.msra.mxu0 %v838
        %854 = vmatprep.subr.mxu0 0.0
        %855 = vmatpush1.msra.mxu0 %v839
        %856 = vmatprep.subr.mxu0 0.0
        %857 = vmatpush1.msra.mxu0 0.0
        %858 = vmatprep.subr.mxu0 0.0
        %859 = vmatpush1.msra.mxu0 0.0
        %860 = vmatprep.subr.mxu0 0.0
        %861 = vmatpush1.msra.mxu0 0.0
        %862 = vmatprep.subr.mxu0 0.0
        %863 = vmatpush1.msra.mxu0 0.0
        %864 = vmatprep.subr.mxu0 0.0
        %865 = vmatpush1.msra.mxu0 0.0
        %866 = vmatprep.subr.mxu0 0.0
        %867 = vmatpush1.msra.mxu0 0.0
        %868 = vmatprep.subr.mxu0 0.0
        %869 = vmatpush1.msra.mxu0 0.0
        %870 = vmatprep.subr.mxu0 0.0
        %871 = vmatpush1.msra.mxu0 0.0
        %872 = vmatprep.subr.mxu0 0.0
        %873 = vmatpush1.msra.mxu0 0.0
        %874 = vmatprep.subr.mxu0 0.0
        %875 = vmatpush1.msra.mxu0 0.0
        %876 = vmatprep.subr.mxu0 0.0
        %877 = vmatpush1.msra.mxu0 0.0
        %878 = vmatprep.subr.mxu0 0.0
        %879 = vmatpush1.msra.mxu0 0.0
        %880 = vmatprep.subr.mxu0 0.0
        %881 = vmatpush1.msra.mxu0 0.0
        %882 = vmatprep.subr.mxu0 0.0
        %883 = vmatpush1.msra.mxu0 0.0
        %884 = vmatprep.subr.mxu0 0.0
        %885 = vmatpush1.msra.mxu0 0.0
        %886 = vmatprep.subr.mxu0 0.0
        %887 = vmatpush1.msra.mxu0 0.0
        %888 = vmatprep.subr.mxu0 0.0
        %889 = vmatpush1.msra.mxu0 0.0
        %890 = vmatprep.subr.mxu0 0.0
        %891 = vmatpush1.msra.mxu0 0.0
        %892 = vmatprep.subr.mxu0 0.0
        %893 = vmatpush1.msra.mxu0 0.0
        %894 = vmatprep.subr.mxu0 0.0
        %895 = vmatpush1.msra.mxu0 0.0
        %896 = vmatprep.subr.mxu0 0.0
        %897 = vmatpush1.msra.mxu0 0.0
        %898 = vmatprep.subr.mxu0 0.0
        %899 = vmatpush1.msra.mxu0 0.0
        %900 = vmatprep.subr.mxu0 0.0
        %901 = vmatpush1.msra.mxu0 0.0
        %902 = vmatprep.subr.mxu0 0.0
        %903 = vmatpush1.msra.mxu0 0.0
        %904 = vmatprep.subr.mxu0 0.0
        %905 = vmatpush1.msra.mxu0 0.0
        %906 = vmatprep.subr.mxu0 0.0
        %907 = vmatpush1.msra.mxu0 0.0
        %908 = vmatprep.subr.mxu0 0.0
        %909 = vmatpush1.msra.mxu0 0.0
        %910 = vmatprep.subr.mxu0 0.0
        %911 = vmatpush1.msra.mxu0 0.0
        %912 = vmatprep.mubr.f32.mxu0 0.0
        %913 = vmatmul.mubr.f32.gmra.mrb[0].mxu0 %v432
        %v914 = vpop.f32.mrb[0].mxu0
        %v915 = vadd.f32 %v846, %v914
        %v916 = vpop.f32.mrb[0].mxu0
        %917 = vdwg.mxu0
        %v918 = vmul.f32 %v915, 0.35355338
        %s919 = scalar_lea.vmem %s4, 32
        %v920 = vld [vmem:[%s919] sm:$0xff]
        %v921 = vld [vmem:[%s919 + $0x8] sm:$0xff]
        %v922 = vld [vmem:[%s919 + $0x10] sm:$0xff]
        %v923 = vld [vmem:[%s919 + $0x18] sm:$0xff]
        %s924 = scalar_lea.vmem %s7, 1
        %v925 = vld [vmem:[%s924] sm:$0x1]
        %v927 = vlaneseq
        %v928 = vshrl.u32 %v927, 7
        %v929 = vsub.s32 0, %v928
        %v930 = vrot.slane %v925, %v929
        %932 = vmatprep.subr.mxu0 0.0
        %933 = vmatpush1.msra.mxu0 %v920
        %934 = vmatprep.subr.mxu0 0.0
        %935 = vmatpush1.msra.mxu0 %v921
        %936 = vmatprep.subr.mxu0 0.0
        %937 = vmatpush1.msra.mxu0 %v922
        %938 = vmatprep.subr.mxu0 0.0
        %939 = vmatpush1.msra.mxu0 %v923
        %940 = vmatprep.subr.mxu0 0.0
        %941 = vmatpush1.msra.mxu0 0.0
        %942 = vmatprep.subr.mxu0 0.0
        %943 = vmatpush1.msra.mxu0 0.0
        %944 = vmatprep.subr.mxu0 0.0
        %945 = vmatpush1.msra.mxu0 0.0
        %946 = vmatprep.subr.mxu0 0.0
        %947 = vmatpush1.msra.mxu0 0.0
        %948 = vmatprep.subr.mxu0 0.0
        %949 = vmatpush1.msra.mxu0 0.0
        %950 = vmatprep.subr.mxu0 0.0
        %951 = vmatpush1.msra.mxu0 0.0
        %952 = vmatprep.subr.mxu0 0.0
        %953 = vmatpush1.msra.mxu0 0.0
        %954 = vmatprep.subr.mxu0 0.0
        %955 = vmatpush1.msra.mxu0 0.0
        %956 = vmatprep.subr.mxu0 0.0
        %957 = vmatpush1.msra.mxu0 0.0
        %958 = vmatprep.subr.mxu0 0.0
        %959 = vmatpush1.msra.mxu0 0.0
        %960 = vmatprep.subr.mxu0 0.0
        %961 = vmatpush1.msra.mxu0 0.0
        %962 = vmatprep.subr.mxu0 0.0
        %963 = vmatpush1.msra.mxu0 0.0
        %964 = vmatprep.subr.mxu0 0.0
        %965 = vmatpush1.msra.mxu0 0.0
        %966 = vmatprep.subr.mxu0 0.0
        %967 = vmatpush1.msra.mxu0 0.0
        %968 = vmatprep.subr.mxu0 0.0
        %969 = vmatpush1.msra.mxu0 0.0
        %970 = vmatprep.subr.mxu0 0.0
        %971 = vmatpush1.msra.mxu0 0.0
        %972 = vmatprep.subr.mxu0 0.0
        %973 = vmatpush1.msra.mxu0 0.0
        %974 = vmatprep.subr.mxu0 0.0
        %975 = vmatpush1.msra.mxu0 0.0
        %976 = vmatprep.subr.mxu0 0.0
        %977 = vmatpush1.msra.mxu0 0.0
        %978 = vmatprep.subr.mxu0 0.0
        %979 = vmatpush1.msra.mxu0 0.0
        %980 = vmatprep.subr.mxu0 0.0
        %981 = vmatpush1.msra.mxu0 0.0
        %982 = vmatprep.subr.mxu0 0.0
        %983 = vmatpush1.msra.mxu0 0.0
        %984 = vmatprep.subr.mxu0 0.0
        %985 = vmatpush1.msra.mxu0 0.0
        %986 = vmatprep.subr.mxu0 0.0
        %987 = vmatpush1.msra.mxu0 0.0
        %988 = vmatprep.subr.mxu0 0.0
        %989 = vmatpush1.msra.mxu0 0.0
        %990 = vmatprep.subr.mxu0 0.0
        %991 = vmatpush1.msra.mxu0 0.0
        %992 = vmatprep.subr.mxu0 0.0
        %993 = vmatpush1.msra.mxu0 0.0
        %994 = vmatprep.subr.mxu0 0.0
        %995 = vmatpush1.msra.mxu0 0.0
        %996 = vmatprep.mubr.f32.mxu0 0.0
        %997 = vmatmul.mubr.f32.gmra.mrb[0].mxu0 %v517
        %v998 = vpop.f32.mrb[0].mxu0
        %v999 = vadd.f32 %v930, %v998
        %v1000 = vpop.f32.mrb[0].mxu0
        %1001 = vdwg.mxu0
        %s1002 = scalar_lea.vmem %s5, 32
        %v1003 = vld [vmem:[%s1002] sm:$0xff]
        %v1004 = vld [vmem:[%s1002 + $0x8] sm:$0xff]
        %v1005 = vld [vmem:[%s1002 + $0x10] sm:$0xff]
        %v1006 = vld [vmem:[%s1002 + $0x18] sm:$0xff]
        %s1007 = scalar_lea.vmem %s8, 1
        %v1008 = vld [vmem:[%s1007] sm:$0x1]
        %v1010 = vlaneseq
        %v1011 = vshrl.u32 %v1010, 7
        %v1012 = vsub.s32 0, %v1011
        %v1013 = vrot.slane %v1008, %v1012
        %1015 = vmatprep.subr.mxu0 0.0
        %1016 = vmatpush1.msra.mxu0 %v1003
        %1017 = vmatprep.subr.mxu0 0.0
        %1018 = vmatpush1.msra.mxu0 %v1004
        %1019 = vmatprep.subr.mxu0 0.0
        %1020 = vmatpush1.msra.mxu0 %v1005
        %1021 = vmatprep.subr.mxu0 0.0
        %1022 = vmatpush1.msra.mxu0 %v1006
        %1023 = vmatprep.subr.mxu0 0.0
        %1024 = vmatpush1.msra.mxu0 0.0
        %1025 = vmatprep.subr.mxu0 0.0
        %1026 = vmatpush1.msra.mxu0 0.0
        %1027 = vmatprep.subr.mxu0 0.0
        %1028 = vmatpush1.msra.mxu0 0.0
        %1029 = vmatprep.subr.mxu0 0.0
        %1030 = vmatpush1.msra.mxu0 0.0
        %1031 = vmatprep.subr.mxu0 0.0
        %1032 = vmatpush1.msra.mxu0 0.0
        %1033 = vmatprep.subr.mxu0 0.0
        %1034 = vmatpush1.msra.mxu0 0.0
        %1035 = vmatprep.subr.mxu0 0.0
        %1036 = vmatpush1.msra.mxu0 0.0
        %1037 = vmatprep.subr.mxu0 0.0
        %1038 = vmatpush1.msra.mxu0 0.0
        %1039 = vmatprep.subr.mxu0 0.0
        %1040 = vmatpush1.msra.mxu0 0.0
        %1041 = vmatprep.subr.mxu0 0.0
        %1042 = vmatpush1.msra.mxu0 0.0
        %1043 = vmatprep.subr.mxu0 0.0
        %1044 = vmatpush1.msra.mxu0 0.0
        %1045 = vmatprep.subr.mxu0 0.0
        %1046 = vmatpush1.msra.mxu0 0.0
        %1047 = vmatprep.subr.mxu0 0.0
        %1048 = vmatpush1.msra.mxu0 0.0
        %1049 = vmatprep.subr.mxu0 0.0
        %1050 = vmatpush1.msra.mxu0 0.0
        %1051 = vmatprep.subr.mxu0 0.0
        %1052 = vmatpush1.msra.mxu0 0.0
        %1053 = vmatprep.subr.mxu0 0.0
        %1054 = vmatpush1.msra.mxu0 0.0
        %1055 = vmatprep.subr.mxu0 0.0
        %1056 = vmatpush1.msra.mxu0 0.0
        %1057 = vmatprep.subr.mxu0 0.0
        %1058 = vmatpush1.msra.mxu0 0.0
        %1059 = vmatprep.subr.mxu0 0.0
        %1060 = vmatpush1.msra.mxu0 0.0
        %1061 = vmatprep.subr.mxu0 0.0
        %1062 = vmatpush1.msra.mxu0 0.0
        %1063 = vmatprep.subr.mxu0 0.0
        %1064 = vmatpush1.msra.mxu0 0.0
        %1065 = vmatprep.subr.mxu0 0.0
        %1066 = vmatpush1.msra.mxu0 0.0
        %1067 = vmatprep.subr.mxu0 0.0
        %1068 = vmatpush1.msra.mxu0 0.0
        %1069 = vmatprep.subr.mxu0 0.0
        %1070 = vmatpush1.msra.mxu0 0.0
        %1071 = vmatprep.subr.mxu0 0.0
        %1072 = vmatpush1.msra.mxu0 0.0
        %1073 = vmatprep.subr.mxu0 0.0
        %1074 = vmatpush1.msra.mxu0 0.0
        %1075 = vmatprep.subr.mxu0 0.0
        %1076 = vmatpush1.msra.mxu0 0.0
        %1077 = vmatprep.subr.mxu0 0.0
        %1078 = vmatpush1.msra.mxu0 0.0
        %1079 = vmatprep.mubr.f32.mxu0 0.0
        %1080 = vmatmul.mubr.f32.gmra.mrb[0].mxu0 %v601
        %v1081 = vpop.f32.mrb[0].mxu0
        %v1082 = vadd.f32 %v1013, %v1081
        %v1083 = vpop.f32.mrb[0].mxu0
        %1084 = vdwg.mxu0
        %v1086 = vsel %vm673, %v918, 0
        %v1089 = vsel %vm673, %v999, 0
        %1091 = vmatprep.subr.mxu0 0.0
        %1092 = vmatpush1.xpose.msra.mxu0 %v1089
        %1093 = vmatprep.subr.mxu0 0.0
        %1094 = vmatpush1.xpose.msra.mxu0 0.0
        %1095 = vmatprep.subr.mxu0 0.0
        %1096 = vmatpush1.xpose.msra.mxu0 0.0
        %1097 = vmatprep.subr.mxu0 0.0
        %1098 = vmatpush1.xpose.msra.mxu0 0.0
        %1099 = vmatprep.subr.mxu0 0.0
        %1100 = vmatpush1.xpose.msra.mxu0 0.0
        %1101 = vmatprep.subr.mxu0 0.0
        %1102 = vmatpush1.xpose.msra.mxu0 0.0
        %1103 = vmatprep.subr.mxu0 0.0
        %1104 = vmatpush1.xpose.msra.mxu0 0.0
        %1105 = vmatprep.subr.mxu0 0.0
        %1106 = vmatpush1.xpose.msra.mxu0 0.0
        %1107 = vmatprep.subr.mxu0 0.0
        %1108 = vmatpush1.xpose.msra.mxu0 0.0
        %1109 = vmatprep.subr.mxu0 0.0
        %1110 = vmatpush1.xpose.msra.mxu0 0.0
        %1111 = vmatprep.subr.mxu0 0.0
        %1112 = vmatpush1.xpose.msra.mxu0 0.0
        %1113 = vmatprep.subr.mxu0 0.0
        %1114 = vmatpush1.xpose.msra.mxu0 0.0
        %1115 = vmatprep.subr.mxu0 0.0
        %1116 = vmatpush1.xpose.msra.mxu0 0.0
        %1117 = vmatprep.subr.mxu0 0.0
        %1118 = vmatpush1.xpose.msra.mxu0 0.0
        %1119 = vmatprep.subr.mxu0 0.0
        %1120 = vmatpush1.xpose.msra.mxu0 0.0
        %1121 = vmatprep.subr.mxu0 0.0
        %1122 = vmatpush1.xpose.msra.mxu0 0.0
        %1123 = vmatprep.subr.mxu0 0.0
        %1124 = vmatpush1.xpose.msra.mxu0 0.0
        %1125 = vmatprep.subr.mxu0 0.0
        %1126 = vmatpush1.xpose.msra.mxu0 0.0
        %1127 = vmatprep.subr.mxu0 0.0
        %1128 = vmatpush1.xpose.msra.mxu0 0.0
        %1129 = vmatprep.subr.mxu0 0.0
        %1130 = vmatpush1.xpose.msra.mxu0 0.0
        %1131 = vmatprep.subr.mxu0 0.0
        %1132 = vmatpush1.xpose.msra.mxu0 0.0
        %1133 = vmatprep.subr.mxu0 0.0
        %1134 = vmatpush1.xpose.msra.mxu0 0.0
        %1135 = vmatprep.subr.mxu0 0.0
        %1136 = vmatpush1.xpose.msra.mxu0 0.0
        %1137 = vmatprep.subr.mxu0 0.0
        %1138 = vmatpush1.xpose.msra.mxu0 0.0
        %1139 = vmatprep.subr.mxu0 0.0
        %1140 = vmatpush1.xpose.msra.mxu0 0.0
        %1141 = vmatprep.subr.mxu0 0.0
        %1142 = vmatpush1.xpose.msra.mxu0 0.0
        %1143 = vmatprep.subr.mxu0 0.0
        %1144 = vmatpush1.xpose.msra.mxu0 0.0
        %1145 = vmatprep.subr.mxu0 0.0
        %1146 = vmatpush1.xpose.msra.mxu0 0.0
        %1147 = vmatprep.subr.mxu0 0.0
        %1148 = vmatpush1.xpose.msra.mxu0 0.0
        %1149 = vmatprep.subr.mxu0 0.0
        %1150 = vmatpush1.xpose.msra.mxu0 0.0
        %1151 = vmatprep.subr.mxu0 0.0
        %1152 = vmatpush1.xpose.msra.mxu0 0.0
        %1153 = vmatprep.subr.mxu0 0.0
        %1154 = vmatpush1.xpose.msra.mxu0 0.0
        %1155 = vmatprep.mubr.f32.mxu0 0.0
        %1156 = vmatmul.mubr.f32.gmra.mrb[0].mxu0 %v1086
        %v1157 = vpop.f32.mrb[0].mxu0
        %v1158 = vadd.f32 0.0, %v1157
        %v1159 = vpop.f32.mrb[0].mxu0
        %1160 = vdwg.mxu0
        %v1161 = vsel %vm673, %v1158, -inf
        %1162 = vmax.xlane.f32.xlu0 %v1161
        %v1163 = vpop.xlane.xlu0 %1162
        %v1164 = vsub.f32 %v1158, %v1163
        %v1165 = vmul.f32 %v1164, 1.442695
        %v1166 = vpow.pop %v1165
        %v1167 = vsel %vm673, %v1166, 0.0
        %1168 = vadd.xlane.f32.xlu0 %v1167
        %v1169 = vpop.xlane.xlu0 %1168
        %v1170 = vrcp.pop %v1169
        %v1171 = vmul.f32 %v1166, %v1170
        %v1173 = vsel %vm673, %v1171, 0
        %1175 = vmatprep.subr.mxu0 0.0
        %1176 = vmatpush1.msra.mxu0 %v1082
        %1177 = vmatprep.subr.mxu0 0.0
        %1178 = vmatpush1.msra.mxu0 0.0
        %1179 = vmatprep.subr.mxu0 0.0
        %1180 = vmatpush1.msra.mxu0 0.0
        %1181 = vmatprep.subr.mxu0 0.0
        %1182 = vmatpush1.msra.mxu0 0.0
        %1183 = vmatprep.subr.mxu0 0.0
        %1184 = vmatpush1.msra.mxu0 0.0
        %1185 = vmatprep.subr.mxu0 0.0
        %1186 = vmatpush1.msra.mxu0 0.0
        %1187 = vmatprep.subr.mxu0 0.0
        %1188 = vmatpush1.msra.mxu0 0.0
        %1189 = vmatprep.subr.mxu0 0.0
        %1190 = vmatpush1.msra.mxu0 0.0
        %1191 = vmatprep.subr.mxu0 0.0
        %1192 = vmatpush1.msra.mxu0 0.0
        %1193 = vmatprep.subr.mxu0 0.0
        %1194 = vmatpush1.msra.mxu0 0.0
        %1195 = vmatprep.subr.mxu0 0.0
        %1196 = vmatpush1.msra.mxu0 0.0
        %1197 = vmatprep.subr.mxu0 0.0
        %1198 = vmatpush1.msra.mxu0 0.0
        %1199 = vmatprep.subr.mxu0 0.0
        %1200 = vmatpush1.msra.mxu0 0.0
        %1201 = vmatprep.subr.mxu0 0.0
        %1202 = vmatpush1.msra.mxu0 0.0
        %1203 = vmatprep.subr.mxu0 0.0
        %1204 = vmatpush1.msra.mxu0 0.0
        %1205 = vmatprep.subr.mxu0 0.0
        %1206 = vmatpush1.msra.mxu0 0.0
        %1207 = vmatprep.subr.mxu0 0.0
        %1208 = vmatpush1.msra.mxu0 0.0
        %1209 = vmatprep.subr.mxu0 0.0
        %1210 = vmatpush1.msra.mxu0 0.0
        %1211 = vmatprep.subr.mxu0 0.0
        %1212 = vmatpush1.msra.mxu0 0.0
        %1213 = vmatprep.subr.mxu0 0.0
        %1214 = vmatpush1.msra.mxu0 0.0
        %1215 = vmatprep.subr.mxu0 0.0
        %1216 = vmatpush1.msra.mxu0 0.0
        %1217 = vmatprep.subr.mxu0 0.0
        %1218 = vmatpush1.msra.mxu0 0.0
        %1219 = vmatprep.subr.mxu0 0.0
        %1220 = vmatpush1.msra.mxu0 0.0
        %1221 = vmatprep.subr.mxu0 0.0
        %1222 = vmatpush1.msra.mxu0 0.0
        %1223 = vmatprep.subr.mxu0 0.0
        %1224 = vmatpush1.msra.mxu0 0.0
        %1225 = vmatprep.subr.mxu0 0.0
        %1226 = vmatpush1.msra.mxu0 0.0
        %1227 = vmatprep.subr.mxu0 0.0
        %1228 = vmatpush1.msra.mxu0 0.0
        %1229 = vmatprep.subr.mxu0 0.0
        %1230 = vmatpush1.msra.mxu0 0.0
        %1231 = vmatprep.subr.mxu0 0.0
        %1232 = vmatpush1.msra.mxu0 0.0
        %1233 = vmatprep.subr.mxu0 0.0
        %1234 = vmatpush1.msra.mxu0 0.0
        %1235 = vmatprep.subr.mxu0 0.0
        %1236 = vmatpush1.msra.mxu0 0.0
        %1237 = vmatprep.subr.mxu0 0.0
        %1238 = vmatpush1.msra.mxu0 0.0
        %1239 = vmatprep.mubr.f32.mxu0 0.0
        %1240 = vmatmul.mubr.f32.gmra.mrb[0].mxu0 %v1173
        %v1241 = vpop.f32.mrb[0].mxu0
        %v1242 = vadd.f32 0.0, %v1241
        %v1243 = vpop.f32.mrb[0].mxu0
        %1244 = vdwg.mxu0
        %1245 = vst.msk [vmem:[#allocation2 + $0x8] sm:$0xff] %vm673, %v1242
        %s1246 = scalar_lea.vmem %s3, 64
        %v1247 = vld [vmem:[%s1246] sm:$0xff]
        %v1248 = vld [vmem:[%s1246 + $0x8] sm:$0xff]
        %v1249 = vld [vmem:[%s1246 + $0x10] sm:$0xff]
        %v1250 = vld [vmem:[%s1246 + $0x18] sm:$0xff]
        %s1251 = scalar_lea.vmem %s6, 2
        %v1252 = vld [vmem:[%s1251] sm:$0x1]
        %v1254 = vlaneseq
        %v1255 = vshrl.u32 %v1254, 7
        %v1256 = vsub.s32 0, %v1255
        %v1257 = vrot.slane %v1252, %v1256
        %1259 = vmatprep.subr.mxu0 0.0
        %1260 = vmatpush1.msra.mxu0 %v1247
        %1261 = vmatprep.subr.mxu0 0.0
        %1262 = vmatpush1.msra.mxu0 %v1248
        %1263 = vmatprep.subr.mxu0 0.0
        %1264 = vmatpush1.msra.mxu0 %v1249
        %1265 = vmatprep.subr.mxu0 0.0
        %1266 = vmatpush1.msra.mxu0 %v1250
        %1267 = vmatprep.subr.mxu0 0.0
        %1268 = vmatpush1.msra.mxu0 0.0
        %1269 = vmatprep.subr.mxu0 0.0
        %1270 = vmatpush1.msra.mxu0 0.0
        %1271 = vmatprep.subr.mxu0 0.0
        %1272 = vmatpush1.msra.mxu0 0.0
        %1273 = vmatprep.subr.mxu0 0.0
        %1274 = vmatpush1.msra.mxu0 0.0
        %1275 = vmatprep.subr.mxu0 0.0
        %1276 = vmatpush1.msra.mxu0 0.0
        %1277 = vmatprep.subr.mxu0 0.0
        %1278 = vmatpush1.msra.mxu0 0.0
        %1279 = vmatprep.subr.mxu0 0.0
        %1280 = vmatpush1.msra.mxu0 0.0
        %1281 = vmatprep.subr.mxu0 0.0
        %1282 = vmatpush1.msra.mxu0 0.0
        %1283 = vmatprep.subr.mxu0 0.0
        %1284 = vmatpush1.msra.mxu0 0.0
        %1285 = vmatprep.subr.mxu0 0.0
        %1286 = vmatpush1.msra.mxu0 0.0
        %1287 = vmatprep.subr.mxu0 0.0
        %1288 = vmatpush1.msra.mxu0 0.0
        %1289 = vmatprep.subr.mxu0 0.0
        %1290 = vmatpush1.msra.mxu0 0.0
        %1291 = vmatprep.subr.mxu0 0.0
        %1292 = vmatpush1.msra.mxu0 0.0
        %1293 = vmatprep.subr.mxu0 0.0
        %1294 = vmatpush1.msra.mxu0 0.0
        %1295 = vmatprep.subr.mxu0 0.0
        %1296 = vmatpush1.msra.mxu0 0.0
        %1297 = vmatprep.subr.mxu0 0.0
        %1298 = vmatpush1.msra.mxu0 0.0
        %1299 = vmatprep.subr.mxu0 0.0
        %1300 = vmatpush1.msra.mxu0 0.0
        %1301 = vmatprep.subr.mxu0 0.0
        %1302 = vmatpush1.msra.mxu0 0.0
        %1303 = vmatprep.subr.mxu0 0.0
        %1304 = vmatpush1.msra.mxu0 0.0
        %1305 = vmatprep.subr.mxu0 0.0
        %1306 = vmatpush1.msra.mxu0 0.0
        %1307 = vmatprep.subr.mxu0 0.0
        %1308 = vmatpush1.msra.mxu0 0.0
        %1309 = vmatprep.subr.mxu0 0.0
        %1310 = vmatpush1.msra.mxu0 0.0
        %1311 = vmatprep.subr.mxu0 0.0
        %1312 = vmatpush1.msra.mxu0 0.0
        %1313 = vmatprep.subr.mxu0 0.0
        %1314 = vmatpush1.msra.mxu0 0.0
        %1315 = vmatprep.subr.mxu0 0.0
        %1316 = vmatpush1.msra.mxu0 0.0
        %1317 = vmatprep.subr.mxu0 0.0
        %1318 = vmatpush1.msra.mxu0 0.0
        %1319 = vmatprep.subr.mxu0 0.0
        %1320 = vmatpush1.msra.mxu0 0.0
        %1321 = vmatprep.subr.mxu0 0.0
        %1322 = vmatpush1.msra.mxu0 0.0
        %1323 = vmatprep.mubr.f32.mxu0 0.0
        %1324 = vmatmul.mubr.f32.gmra.mrb[0].mxu0 %v432
        %v1325 = vpop.f32.mrb[0].mxu0
        %v1326 = vadd.f32 %v1257, %v1325
        %v1327 = vpop.f32.mrb[0].mxu0
        %1328 = vdwg.mxu0
        %v1329 = vmul.f32 %v1326, 0.35355338
        %s1330 = scalar_lea.vmem %s4, 64
        %v1331 = vld [vmem:[%s1330] sm:$0xff]
        %v1332 = vld [vmem:[%s1330 + $0x8] sm:$0xff]
        %v1333 = vld [vmem:[%s1330 + $0x10] sm:$0xff]
        %v1334 = vld [vmem:[%s1330 + $0x18] sm:$0xff]
        %s1335 = scalar_lea.vmem %s7, 2
        %v1336 = vld [vmem:[%s1335] sm:$0x1]
        %v1338 = vlaneseq
        %v1339 = vshrl.u32 %v1338, 7
        %v1340 = vsub.s32 0, %v1339
        %v1341 = vrot.slane %v1336, %v1340
        %1343 = vmatprep.subr.mxu0 0.0
        %1344 = vmatpush1.msra.mxu0 %v1331
        %1345 = vmatprep.subr.mxu0 0.0
        %1346 = vmatpush1.msra.mxu0 %v1332
        %1347 = vmatprep.subr.mxu0 0.0
        %1348 = vmatpush1.msra.mxu0 %v1333
        %1349 = vmatprep.subr.mxu0 0.0
        %1350 = vmatpush1.msra.mxu0 %v1334
        %1351 = vmatprep.subr.mxu0 0.0
        %1352 = vmatpush1.msra.mxu0 0.0
        %1353 = vmatprep.subr.mxu0 0.0
        %1354 = vmatpush1.msra.mxu0 0.0
        %1355 = vmatprep.subr.mxu0 0.0
        %1356 = vmatpush1.msra.mxu0 0.0
        %1357 = vmatprep.subr.mxu0 0.0
        %1358 = vmatpush1.msra.mxu0 0.0
        %1359 = vmatprep.subr.mxu0 0.0
        %1360 = vmatpush1.msra.mxu0 0.0
        %1361 = vmatprep.subr.mxu0 0.0
        %1362 = vmatpush1.msra.mxu0 0.0
        %1363 = vmatprep.subr.mxu0 0.0
        %1364 = vmatpush1.msra.mxu0 0.0
        %1365 = vmatprep.subr.mxu0 0.0
        %1366 = vmatpush1.msra.mxu0 0.0
        %1367 = vmatprep.subr.mxu0 0.0
        %1368 = vmatpush1.msra.mxu0 0.0
        %1369 = vmatprep.subr.mxu0 0.0
        %1370 = vmatpush1.msra.mxu0 0.0
        %1371 = vmatprep.subr.mxu0 0.0
        %1372 = vmatpush1.msra.mxu0 0.0
        %1373 = vmatprep.subr.mxu0 0.0
        %1374 = vmatpush1.msra.mxu0 0.0
        %1375 = vmatprep.subr.mxu0 0.0
        %1376 = vmatpush1.msra.mxu0 0.0
        %1377 = vmatprep.subr.mxu0 0.0
        %1378 = vmatpush1.msra.mxu0 0.0
        %1379 = vmatprep.subr.mxu0 0.0
        %1380 = vmatpush1.msra.mxu0 0.0
        %1381 = vmatprep.subr.mxu0 0.0
        %1382 = vmatpush1.msra.mxu0 0.0
        %1383 = vmatprep.subr.mxu0 0.0
        %1384 = vmatpush1.msra.mxu0 0.0
        %1385 = vmatprep.subr.mxu0 0.0
        %1386 = vmatpush1.msra.mxu0 0.0
        %1387 = vmatprep.subr.mxu0 0.0
        %1388 = vmatpush1.msra.mxu0 0.0
        %1389 = vmatprep.subr.mxu0 0.0
        %1390 = vmatpush1.msra.mxu0 0.0
        %1391 = vmatprep.subr.mxu0 0.0
        %1392 = vmatpush1.msra.mxu0 0.0
        %1393 = vmatprep.subr.mxu0 0.0
        %1394 = vmatpush1.msra.mxu0 0.0
        %1395 = vmatprep.subr.mxu0 0.0
        %1396 = vmatpush1.msra.mxu0 0.0
        %1397 = vmatprep.subr.mxu0 0.0
        %1398 = vmatpush1.msra.mxu0 0.0
        %1399 = vmatprep.subr.mxu0 0.0
        %1400 = vmatpush1.msra.mxu0 0.0
        %1401 = vmatprep.subr.mxu0 0.0
        %1402 = vmatpush1.msra.mxu0 0.0
        %1403 = vmatprep.subr.mxu0 0.0
        %1404 = vmatpush1.msra.mxu0 0.0
        %1405 = vmatprep.subr.mxu0 0.0
        %1406 = vmatpush1.msra.mxu0 0.0
        %1407 = vmatprep.mubr.f32.mxu0 0.0
        %1408 = vmatmul.mubr.f32.gmra.mrb[0].mxu0 %v517
        %v1409 = vpop.f32.mrb[0].mxu0
        %v1410 = vadd.f32 %v1341, %v1409
        %v1411 = vpop.f32.mrb[0].mxu0
        %1412 = vdwg.mxu0
        %s1413 = scalar_lea.vmem %s5, 64
        %v1414 = vld [vmem:[%s1413] sm:$0xff]
        %v1415 = vld [vmem:[%s1413 + $0x8] sm:$0xff]
        %v1416 = vld [vmem:[%s1413 + $0x10] sm:$0xff]
        %v1417 = vld [vmem:[%s1413 + $0x18] sm:$0xff]
        %s1418 = scalar_lea.vmem %s8, 2
        %v1419 = vld [vmem:[%s1418] sm:$0x1]
        %v1421 = vlaneseq
        %v1422 = vshrl.u32 %v1421, 7
        %v1423 = vsub.s32 0, %v1422
        %v1424 = vrot.slane %v1419, %v1423
        %1426 = vmatprep.subr.mxu0 0.0
        %1427 = vmatpush1.msra.mxu0 %v1414
        %1428 = vmatprep.subr.mxu0 0.0
        %1429 = vmatpush1.msra.mxu0 %v1415
        %1430 = vmatprep.subr.mxu0 0.0
        %1431 = vmatpush1.msra.mxu0 %v1416
        %1432 = vmatprep.subr.mxu0 0.0
        %1433 = vmatpush1.msra.mxu0 %v1417
        %1434 = vmatprep.subr.mxu0 0.0
        %1435 = vmatpush1.msra.mxu0 0.0
        %1436 = vmatprep.subr.mxu0 0.0
        %1437 = vmatpush1.msra.mxu0 0.0
        %1438 = vmatprep.subr.mxu0 0.0
        %1439 = vmatpush1.msra.mxu0 0.0
        %1440 = vmatprep.subr.mxu0 0.0
        %1441 = vmatpush1.msra.mxu0 0.0
        %1442 = vmatprep.subr.mxu0 0.0
        %1443 = vmatpush1.msra.mxu0 0.0
        %1444 = vmatprep.subr.mxu0 0.0
        %1445 = vmatpush1.msra.mxu0 0.0
        %1446 = vmatprep.subr.mxu0 0.0
        %1447 = vmatpush1.msra.mxu0 0.0
        %1448 = vmatprep.subr.mxu0 0.0
        %1449 = vmatpush1.msra.mxu0 0.0
        %1450 = vmatprep.subr.mxu0 0.0
        %1451 = vmatpush1.msra.mxu0 0.0
        %1452 = vmatprep.subr.mxu0 0.0
        %1453 = vmatpush1.msra.mxu0 0.0
        %1454 = vmatprep.subr.mxu0 0.0
        %1455 = vmatpush1.msra.mxu0 0.0
        %1456 = vmatprep.subr.mxu0 0.0
        %1457 = vmatpush1.msra.mxu0 0.0
        %1458 = vmatprep.subr.mxu0 0.0
        %1459 = vmatpush1.msra.mxu0 0.0
        %1460 = vmatprep.subr.mxu0 0.0
        %1461 = vmatpush1.msra.mxu0 0.0
        %1462 = vmatprep.subr.mxu0 0.0
        %1463 = vmatpush1.msra.mxu0 0.0
        %1464 = vmatprep.subr.mxu0 0.0
        %1465 = vmatpush1.msra.mxu0 0.0
        %1466 = vmatprep.subr.mxu0 0.0
        %1467 = vmatpush1.msra.mxu0 0.0
        %1468 = vmatprep.subr.mxu0 0.0
        %1469 = vmatpush1.msra.mxu0 0.0
        %1470 = vmatprep.subr.mxu0 0.0
        %1471 = vmatpush1.msra.mxu0 0.0
        %1472 = vmatprep.subr.mxu0 0.0
        %1473 = vmatpush1.msra.mxu0 0.0
        %1474 = vmatprep.subr.mxu0 0.0
        %1475 = vmatpush1.msra.mxu0 0.0
        %1476 = vmatprep.subr.mxu0 0.0
        %1477 = vmatpush1.msra.mxu0 0.0
        %1478 = vmatprep.subr.mxu0 0.0
        %1479 = vmatpush1.msra.mxu0 0.0
        %1480 = vmatprep.subr.mxu0 0.0
        %1481 = vmatpush1.msra.mxu0 0.0
        %1482 = vmatprep.subr.mxu0 0.0
        %1483 = vmatpush1.msra.mxu0 0.0
        %1484 = vmatprep.subr.mxu0 0.0
        %1485 = vmatpush1.msra.mxu0 0.0
        %1486 = vmatprep.subr.mxu0 0.0
        %1487 = vmatpush1.msra.mxu0 0.0
        %1488 = vmatprep.subr.mxu0 0.0
        %1489 = vmatpush1.msra.mxu0 0.0
        %1490 = vmatprep.mubr.f32.mxu0 0.0
        %1491 = vmatmul.mubr.f32.gmra.mrb[0].mxu0 %v601
        %v1492 = vpop.f32.mrb[0].mxu0
        %v1493 = vadd.f32 %v1424, %v1492
        %v1494 = vpop.f32.mrb[0].mxu0
        %1495 = vdwg.mxu0
        %v1497 = vsel %vm673, %v1329, 0
        %v1500 = vsel %vm673, %v1410, 0
        %1502 = vmatprep.subr.mxu0 0.0
        %1503 = vmatpush1.xpose.msra.mxu0 %v1500
        %1504 = vmatprep.subr.mxu0 0.0
        %1505 = vmatpush1.xpose.msra.mxu0 0.0
        %1506 = vmatprep.subr.mxu0 0.0
        %1507 = vmatpush1.xpose.msra.mxu0 0.0
        %1508 = vmatprep.subr.mxu0 0.0
        %1509 = vmatpush1.xpose.msra.mxu0 0.0
        %1510 = vmatprep.subr.mxu0 0.0
        %1511 = vmatpush1.xpose.msra.mxu0 0.0
        %1512 = vmatprep.subr.mxu0 0.0
        %1513 = vmatpush1.xpose.msra.mxu0 0.0
        %1514 = vmatprep.subr.mxu0 0.0
        %1515 = vmatpush1.xpose.msra.mxu0 0.0
        %1516 = vmatprep.subr.mxu0 0.0
        %1517 = vmatpush1.xpose.msra.mxu0 0.0
        %1518 = vmatprep.subr.mxu0 0.0
        %1519 = vmatpush1.xpose.msra.mxu0 0.0
        %1520 = vmatprep.subr.mxu0 0.0
        %1521 = vmatpush1.xpose.msra.mxu0 0.0
        %1522 = vmatprep.subr.mxu0 0.0
        %1523 = vmatpush1.xpose.msra.mxu0 0.0
        %1524 = vmatprep.subr.mxu0 0.0
        %1525 = vmatpush1.xpose.msra.mxu0 0.0
        %1526 = vmatprep.subr.mxu0 0.0
        %1527 = vmatpush1.xpose.msra.mxu0 0.0
        %1528 = vmatprep.subr.mxu0 0.0
        %1529 = vmatpush1.xpose.msra.mxu0 0.0
        %1530 = vmatprep.subr.mxu0 0.0
        %1531 = vmatpush1.xpose.msra.mxu0 0.0
        %1532 = vmatprep.subr.mxu0 0.0
        %1533 = vmatpush1.xpose.msra.mxu0 0.0
        %1534 = vmatprep.subr.mxu0 0.0
        %1535 = vmatpush1.xpose.msra.mxu0 0.0
        %1536 = vmatprep.subr.mxu0 0.0
        %1537 = vmatpush1.xpose.msra.mxu0 0.0
        %1538 = vmatprep.subr.mxu0 0.0
        %1539 = vmatpush1.xpose.msra.mxu0 0.0
        %1540 = vmatprep.subr.mxu0 0.0
        %1541 = vmatpush1.xpose.msra.mxu0 0.0
        %1542 = vmatprep.subr.mxu0 0.0
        %1543 = vmatpush1.xpose.msra.mxu0 0.0
        %1544 = vmatprep.subr.mxu0 0.0
        %1545 = vmatpush1.xpose.msra.mxu0 0.0
        %1546 = vmatprep.subr.mxu0 0.0
        %1547 = vmatpush1.xpose.msra.mxu0 0.0
        %1548 = vmatprep.subr.mxu0 0.0
        %1549 = vmatpush1.xpose.msra.mxu0 0.0
        %1550 = vmatprep.subr.mxu0 0.0
        %1551 = vmatpush1.xpose.msra.mxu0 0.0
        %1552 = vmatprep.subr.mxu0 0.0
        %1553 = vmatpush1.xpose.msra.mxu0 0.0
        %1554 = vmatprep.subr.mxu0 0.0
        %1555 = vmatpush1.xpose.msra.mxu0 0.0
        %1556 = vmatprep.subr.mxu0 0.0
        %1557 = vmatpush1.xpose.msra.mxu0 0.0
        %1558 = vmatprep.subr.mxu0 0.0
        %1559 = vmatpush1.xpose.msra.mxu0 0.0
        %1560 = vmatprep.subr.mxu0 0.0
        %1561 = vmatpush1.xpose.msra.mxu0 0.0
        %1562 = vmatprep.subr.mxu0 0.0
        %1563 = vmatpush1.xpose.msra.mxu0 0.0
        %1564 = vmatprep.subr.mxu0 0.0
        %1565 = vmatpush1.xpose.msra.mxu0 0.0
        %1566 = vmatprep.mubr.f32.mxu0 0.0
        %1567 = vmatmul.mubr.f32.gmra.mrb[0].mxu0 %v1497
        %v1568 = vpop.f32.mrb[0].mxu0
        %v1569 = vadd.f32 0.0, %v1568
        %v1570 = vpop.f32.mrb[0].mxu0
        %1571 = vdwg.mxu0
        %v1572 = vsel %vm673, %v1569, -inf
        %1573 = vmax.xlane.f32.xlu0 %v1572
        %v1574 = vpop.xlane.xlu0 %1573
        %v1575 = vsub.f32 %v1569, %v1574
        %v1576 = vmul.f32 %v1575, 1.442695
        %v1577 = vpow.pop %v1576
        %v1578 = vsel %vm673, %v1577, 0.0
        %1579 = vadd.xlane.f32.xlu0 %v1578
        %v1580 = vpop.xlane.xlu0 %1579
        %v1581 = vrcp.pop %v1580
        %v1582 = vmul.f32 %v1577, %v1581
        %v1584 = vsel %vm673, %v1582, 0
        %1586 = vmatprep.subr.mxu0 0.0
        %1587 = vmatpush1.msra.mxu0 %v1493
        %1588 = vmatprep.subr.mxu0 0.0
        %1589 = vmatpush1.msra.mxu0 0.0
        %1590 = vmatprep.subr.mxu0 0.0
        %1591 = vmatpush1.msra.mxu0 0.0
        %1592 = vmatprep.subr.mxu0 0.0
        %1593 = vmatpush1.msra.mxu0 0.0
        %1594 = vmatprep.subr.mxu0 0.0
        %1595 = vmatpush1.msra.mxu0 0.0
        %1596 = vmatprep.subr.mxu0 0.0
        %1597 = vmatpush1.msra.mxu0 0.0
        %1598 = vmatprep.subr.mxu0 0.0
        %1599 = vmatpush1.msra.mxu0 0.0
        %1600 = vmatprep.subr.mxu0 0.0
        %1601 = vmatpush1.msra.mxu0 0.0
        %1602 = vmatprep.subr.mxu0 0.0
        %1603 = vmatpush1.msra.mxu0 0.0
        %1604 = vmatprep.subr.mxu0 0.0
        %1605 = vmatpush1.msra.mxu0 0.0
        %1606 = vmatprep.subr.mxu0 0.0
        %1607 = vmatpush1.msra.mxu0 0.0
        %1608 = vmatprep.subr.mxu0 0.0
        %1609 = vmatpush1.msra.mxu0 0.0
        %1610 = vmatprep.subr.mxu0 0.0
        %1611 = vmatpush1.msra.mxu0 0.0
        %1612 = vmatprep.subr.mxu0 0.0
        %1613 = vmatpush1.msra.mxu0 0.0
        %1614 = vmatprep.subr.mxu0 0.0
        %1615 = vmatpush1.msra.mxu0 0.0
        %1616 = vmatprep.subr.mxu0 0.0
        %1617 = vmatpush1.msra.mxu0 0.0
        %1618 = vmatprep.subr.mxu0 0.0
        %1619 = vmatpush1.msra.mxu0 0.0
        %1620 = vmatprep.subr.mxu0 0.0
        %1621 = vmatpush1.msra.mxu0 0.0
        %1622 = vmatprep.subr.mxu0 0.0
        %1623 = vmatpush1.msra.mxu0 0.0
        %1624 = vmatprep.subr.mxu0 0.0
        %1625 = vmatpush1.msra.mxu0 0.0
        %1626 = vmatprep.subr.mxu0 0.0
        %1627 = vmatpush1.msra.mxu0 0.0
        %1628 = vmatprep.subr.mxu0 0.0
        %1629 = vmatpush1.msra.mxu0 0.0
        %1630 = vmatprep.subr.mxu0 0.0
        %1631 = vmatpush1.msra.mxu0 0.0
        %1632 = vmatprep.subr.mxu0 0.0
        %1633 = vmatpush1.msra.mxu0 0.0
        %1634 = vmatprep.subr.mxu0 0.0
        %1635 = vmatpush1.msra.mxu0 0.0
        %1636 = vmatprep.subr.mxu0 0.0
        %1637 = vmatpush1.msra.mxu0 0.0
        %1638 = vmatprep.subr.mxu0 0.0
        %1639 = vmatpush1.msra.mxu0 0.0
        %1640 = vmatprep.subr.mxu0 0.0
        %1641 = vmatpush1.msra.mxu0 0.0
        %1642 = vmatprep.subr.mxu0 0.0
        %1643 = vmatpush1.msra.mxu0 0.0
        %1644 = vmatprep.subr.mxu0 0.0
        %1645 = vmatpush1.msra.mxu0 0.0
        %1646 = vmatprep.subr.mxu0 0.0
        %1647 = vmatpush1.msra.mxu0 0.0
        %1648 = vmatprep.subr.mxu0 0.0
        %1649 = vmatpush1.msra.mxu0 0.0
        %1650 = vmatprep.mubr.f32.mxu0 0.0
        %1651 = vmatmul.mubr.f32.gmra.mrb[0].mxu0 %v1584
        %v1652 = vpop.f32.mrb[0].mxu0
        %v1653 = vadd.f32 0.0, %v1652
        %v1654 = vpop.f32.mrb[0].mxu0
        %1655 = vdwg.mxu0
        %1656 = vst.msk [vmem:[#allocation2 + $0x10] sm:$0xff] %vm673, %v1653
        %s1657 = scalar_lea.vmem %s3, 96
        %v1658 = vld [vmem:[%s1657] sm:$0xff]
        %v1659 = vld [vmem:[%s1657 + $0x8] sm:$0xff]
        %v1660 = vld [vmem:[%s1657 + $0x10] sm:$0xff]
        %v1661 = vld [vmem:[%s1657 + $0x18] sm:$0xff]
        %s1662 = scalar_lea.vmem %s6, 3
        %v1663 = vld [vmem:[%s1662] sm:$0x1]
        %v1665 = vlaneseq
        %v1666 = vshrl.u32 %v1665, 7
        %v1667 = vsub.s32 0, %v1666
        %v1668 = vrot.slane %v1663, %v1667
        %1670 = vmatprep.subr.mxu0 0.0
        %1671 = vmatpush1.msra.mxu0 %v1658
        %1672 = vmatprep.subr.mxu0 0.0
        %1673 = vmatpush1.msra.mxu0 %v1659
        %1674 = vmatprep.subr.mxu0 0.0
        %1675 = vmatpush1.msra.mxu0 %v1660
        %1676 = vmatprep.subr.mxu0 0.0
        %1677 = vmatpush1.msra.mxu0 %v1661
        %1678 = vmatprep.subr.mxu0 0.0
        %1679 = vmatpush1.msra.mxu0 0.0
        %1680 = vmatprep.subr.mxu0 0.0
        %1681 = vmatpush1.msra.mxu0 0.0
        %1682 = vmatprep.subr.mxu0 0.0
        %1683 = vmatpush1.msra.mxu0 0.0
        %1684 = vmatprep.subr.mxu0 0.0
        %1685 = vmatpush1.msra.mxu0 0.0
        %1686 = vmatprep.subr.mxu0 0.0
        %1687 = vmatpush1.msra.mxu0 0.0
        %1688 = vmatprep.subr.mxu0 0.0
        %1689 = vmatpush1.msra.mxu0 0.0
        %1690 = vmatprep.subr.mxu0 0.0
        %1691 = vmatpush1.msra.mxu0 0.0
        %1692 = vmatprep.subr.mxu0 0.0
        %1693 = vmatpush1.msra.mxu0 0.0
        %1694 = vmatprep.subr.mxu0 0.0
        %1695 = vmatpush1.msra.mxu0 0.0
        %1696 = vmatprep.subr.mxu0 0.0
        %1697 = vmatpush1.msra.mxu0 0.0
        %1698 = vmatprep.subr.mxu0 0.0
        %1699 = vmatpush1.msra.mxu0 0.0
        %1700 = vmatprep.subr.mxu0 0.0
        %1701 = vmatpush1.msra.mxu0 0.0
        %1702 = vmatprep.subr.mxu0 0.0
        %1703 = vmatpush1.msra.mxu0 0.0
        %1704 = vmatprep.subr.mxu0 0.0
        %1705 = vmatpush1.msra.mxu0 0.0
        %1706 = vmatprep.subr.mxu0 0.0
        %1707 = vmatpush1.msra.mxu0 0.0
        %1708 = vmatprep.subr.mxu0 0.0
        %1709 = vmatpush1.msra.mxu0 0.0
        %1710 = vmatprep.subr.mxu0 0.0
        %1711 = vmatpush1.msra.mxu0 0.0
        %1712 = vmatprep.subr.mxu0 0.0
        %1713 = vmatpush1.msra.mxu0 0.0
        %1714 = vmatprep.subr.mxu0 0.0
        %1715 = vmatpush1.msra.mxu0 0.0
        %1716 = vmatprep.subr.mxu0 0.0
        %1717 = vmatpush1.msra.mxu0 0.0
        %1718 = vmatprep.subr.mxu0 0.0
        %1719 = vmatpush1.msra.mxu0 0.0
        %1720 = vmatprep.subr.mxu0 0.0
        %1721 = vmatpush1.msra.mxu0 0.0
        %1722 = vmatprep.subr.mxu0 0.0
        %1723 = vmatpush1.msra.mxu0 0.0
        %1724 = vmatprep.subr.mxu0 0.0
        %1725 = vmatpush1.msra.mxu0 0.0
        %1726 = vmatprep.subr.mxu0 0.0
        %1727 = vmatpush1.msra.mxu0 0.0
        %1728 = vmatprep.subr.mxu0 0.0
        %1729 = vmatpush1.msra.mxu0 0.0
        %1730 = vmatprep.subr.mxu0 0.0
        %1731 = vmatpush1.msra.mxu0 0.0
        %1732 = vmatprep.subr.mxu0 0.0
        %1733 = vmatpush1.msra.mxu0 0.0
        %1734 = vmatprep.mubr.f32.mxu0 0.0
        %1735 = vmatmul.mubr.f32.gmra.mrb[0].mxu0 %v432
        %v1736 = vpop.f32.mrb[0].mxu0
        %v1737 = vadd.f32 %v1668, %v1736
        %v1738 = vpop.f32.mrb[0].mxu0
        %1739 = vdwg.mxu0
        %v1740 = vmul.f32 %v1737, 0.35355338
        %s1741 = scalar_lea.vmem %s4, 96
        %v1742 = vld [vmem:[%s1741] sm:$0xff]
        %v1743 = vld [vmem:[%s1741 + $0x8] sm:$0xff]
        %v1744 = vld [vmem:[%s1741 + $0x10] sm:$0xff]
        %v1745 = vld [vmem:[%s1741 + $0x18] sm:$0xff]
        %s1746 = scalar_lea.vmem %s7, 3
        %v1747 = vld [vmem:[%s1746] sm:$0x1]
        %v1749 = vlaneseq
        %v1750 = vshrl.u32 %v1749, 7
        %v1751 = vsub.s32 0, %v1750
        %v1752 = vrot.slane %v1747, %v1751
        %1754 = vmatprep.subr.mxu0 0.0
        %1755 = vmatpush1.msra.mxu0 %v1742
        %1756 = vmatprep.subr.mxu0 0.0
        %1757 = vmatpush1.msra.mxu0 %v1743
        %1758 = vmatprep.subr.mxu0 0.0
        %1759 = vmatpush1.msra.mxu0 %v1744
        %1760 = vmatprep.subr.mxu0 0.0
        %1761 = vmatpush1.msra.mxu0 %v1745
        %1762 = vmatprep.subr.mxu0 0.0
        %1763 = vmatpush1.msra.mxu0 0.0
        %1764 = vmatprep.subr.mxu0 0.0
        %1765 = vmatpush1.msra.mxu0 0.0
        %1766 = vmatprep.subr.mxu0 0.0
        %1767 = vmatpush1.msra.mxu0 0.0
        %1768 = vmatprep.subr.mxu0 0.0
        %1769 = vmatpush1.msra.mxu0 0.0
        %1770 = vmatprep.subr.mxu0 0.0
        %1771 = vmatpush1.msra.mxu0 0.0
        %1772 = vmatprep.subr.mxu0 0.0
        %1773 = vmatpush1.msra.mxu0 0.0
        %1774 = vmatprep.subr.mxu0 0.0
        %1775 = vmatpush1.msra.mxu0 0.0
        %1776 = vmatprep.subr.mxu0 0.0
        %1777 = vmatpush1.msra.mxu0 0.0
        %1778 = vmatprep.subr.mxu0 0.0
        %1779 = vmatpush1.msra.mxu0 0.0
        %1780 = vmatprep.subr.mxu0 0.0
        %1781 = vmatpush1.msra.mxu0 0.0
        %1782 = vmatprep.subr.mxu0 0.0
        %1783 = vmatpush1.msra.mxu0 0.0
        %1784 = vmatprep.subr.mxu0 0.0
        %1785 = vmatpush1.msra.mxu0 0.0
        %1786 = vmatprep.subr.mxu0 0.0
        %1787 = vmatpush1.msra.mxu0 0.0
        %1788 = vmatprep.subr.mxu0 0.0
        %1789 = vmatpush1.msra.mxu0 0.0
        %1790 = vmatprep.subr.mxu0 0.0
        %1791 = vmatpush1.msra.mxu0 0.0
        %1792 = vmatprep.subr.mxu0 0.0
        %1793 = vmatpush1.msra.mxu0 0.0
        %1794 = vmatprep.subr.mxu0 0.0
        %1795 = vmatpush1.msra.mxu0 0.0
        %1796 = vmatprep.subr.mxu0 0.0
        %1797 = vmatpush1.msra.mxu0 0.0
        %1798 = vmatprep.subr.mxu0 0.0
        %1799 = vmatpush1.msra.mxu0 0.0
        %1800 = vmatprep.subr.mxu0 0.0
        %1801 = vmatpush1.msra.mxu0 0.0
        %1802 = vmatprep.subr.mxu0 0.0
        %1803 = vmatpush1.msra.mxu0 0.0
        %1804 = vmatprep.subr.mxu0 0.0
        %1805 = vmatpush1.msra.mxu0 0.0
        %1806 = vmatprep.subr.mxu0 0.0
        %1807 = vmatpush1.msra.mxu0 0.0
        %1808 = vmatprep.subr.mxu0 0.0
        %1809 = vmatpush1.msra.mxu0 0.0
        %1810 = vmatprep.subr.mxu0 0.0
        %1811 = vmatpush1.msra.mxu0 0.0
        %1812 = vmatprep.subr.mxu0 0.0
        %1813 = vmatpush1.msra.mxu0 0.0
        %1814 = vmatprep.subr.mxu0 0.0
        %1815 = vmatpush1.msra.mxu0 0.0
        %1816 = vmatprep.subr.mxu0 0.0
        %1817 = vmatpush1.msra.mxu0 0.0
        %1818 = vmatprep.mubr.f32.mxu0 0.0
        %1819 = vmatmul.mubr.f32.gmra.mrb[0].mxu0 %v517
        %v1820 = vpop.f32.mrb[0].mxu0
        %v1821 = vadd.f32 %v1752, %v1820
        %v1822 = vpop.f32.mrb[0].mxu0
        %1823 = vdwg.mxu0
        %s1824 = scalar_lea.vmem %s5, 96
        %v1825 = vld [vmem:[%s1824] sm:$0xff]
        %v1826 = vld [vmem:[%s1824 + $0x8] sm:$0xff]
        %v1827 = vld [vmem:[%s1824 + $0x10] sm:$0xff]
        %v1828 = vld [vmem:[%s1824 + $0x18] sm:$0xff]
        %s1829 = scalar_lea.vmem %s8, 3
        %v1830 = vld [vmem:[%s1829] sm:$0x1]
        %v1832 = vlaneseq
        %v1833 = vshrl.u32 %v1832, 7
        %v1834 = vsub.s32 0, %v1833
        %v1835 = vrot.slane %v1830, %v1834
        %1837 = vmatprep.subr.mxu0 0.0
        %1838 = vmatpush1.msra.mxu0 %v1825
        %1839 = vmatprep.subr.mxu0 0.0
        %1840 = vmatpush1.msra.mxu0 %v1826
        %1841 = vmatprep.subr.mxu0 0.0
        %1842 = vmatpush1.msra.mxu0 %v1827
        %1843 = vmatprep.subr.mxu0 0.0
        %1844 = vmatpush1.msra.mxu0 %v1828
        %1845 = vmatprep.subr.mxu0 0.0
        %1846 = vmatpush1.msra.mxu0 0.0
        %1847 = vmatprep.subr.mxu0 0.0
        %1848 = vmatpush1.msra.mxu0 0.0
        %1849 = vmatprep.subr.mxu0 0.0
        %1850 = vmatpush1.msra.mxu0 0.0
        %1851 = vmatprep.subr.mxu0 0.0
        %1852 = vmatpush1.msra.mxu0 0.0
        %1853 = vmatprep.subr.mxu0 0.0
        %1854 = vmatpush1.msra.mxu0 0.0
        %1855 = vmatprep.subr.mxu0 0.0
        %1856 = vmatpush1.msra.mxu0 0.0
        %1857 = vmatprep.subr.mxu0 0.0
        %1858 = vmatpush1.msra.mxu0 0.0
        %1859 = vmatprep.subr.mxu0 0.0
        %1860 = vmatpush1.msra.mxu0 0.0
        %1861 = vmatprep.subr.mxu0 0.0
        %1862 = vmatpush1.msra.mxu0 0.0
        %1863 = vmatprep.subr.mxu0 0.0
        %1864 = vmatpush1.msra.mxu0 0.0
        %1865 = vmatprep.subr.mxu0 0.0
        %1866 = vmatpush1.msra.mxu0 0.0
        %1867 = vmatprep.subr.mxu0 0.0
        %1868 = vmatpush1.msra.mxu0 0.0
        %1869 = vmatprep.subr.mxu0 0.0
        %1870 = vmatpush1.msra.mxu0 0.0
        %1871 = vmatprep.subr.mxu0 0.0
        %1872 = vmatpush1.msra.mxu0 0.0
        %1873 = vmatprep.subr.mxu0 0.0
        %1874 = vmatpush1.msra.mxu0 0.0
        %1875 = vmatprep.subr.mxu0 0.0
        %1876 = vmatpush1.msra.mxu0 0.0
        %1877 = vmatprep.subr.mxu0 0.0
        %1878 = vmatpush1.msra.mxu0 0.0
        %1879 = vmatprep.subr.mxu0 0.0
        %1880 = vmatpush1.msra.mxu0 0.0
        %1881 = vmatprep.subr.mxu0 0.0
        %1882 = vmatpush1.msra.mxu0 0.0
        %1883 = vmatprep.subr.mxu0 0.0
        %1884 = vmatpush1.msra.mxu0 0.0
        %1885 = vmatprep.subr.mxu0 0.0
        %1886 = vmatpush1.msra.mxu0 0.0
        %1887 = vmatprep.subr.mxu0 0.0
        %1888 = vmatpush1.msra.mxu0 0.0
        %1889 = vmatprep.subr.mxu0 0.0
        %1890 = vmatpush1.msra.mxu0 0.0
        %1891 = vmatprep.subr.mxu0 0.0
        %1892 = vmatpush1.msra.mxu0 0.0
        %1893 = vmatprep.subr.mxu0 0.0
        %1894 = vmatpush1.msra.mxu0 0.0
        %1895 = vmatprep.subr.mxu0 0.0
        %1896 = vmatpush1.msra.mxu0 0.0
        %1897 = vmatprep.subr.mxu0 0.0
        %1898 = vmatpush1.msra.mxu0 0.0
        %1899 = vmatprep.subr.mxu0 0.0
        %1900 = vmatpush1.msra.mxu0 0.0
        %1901 = vmatprep.mubr.f32.mxu0 0.0
        %1902 = vmatmul.mubr.f32.gmra.mrb[0].mxu0 %v601
        %v1903 = vpop.f32.mrb[0].mxu0
        %v1904 = vadd.f32 %v1835, %v1903
        %v1905 = vpop.f32.mrb[0].mxu0
        %1906 = vdwg.mxu0
        %v1908 = vsel %vm673, %v1740, 0
        %v1911 = vsel %vm673, %v1821, 0
        %1913 = vmatprep.subr.mxu0 0.0
        %1914 = vmatpush1.xpose.msra.mxu0 %v1911
        %1915 = vmatprep.subr.mxu0 0.0
        %1916 = vmatpush1.xpose.msra.mxu0 0.0
        %1917 = vmatprep.subr.mxu0 0.0
        %1918 = vmatpush1.xpose.msra.mxu0 0.0
        %1919 = vmatprep.subr.mxu0 0.0
        %1920 = vmatpush1.xpose.msra.mxu0 0.0
        %1921 = vmatprep.subr.mxu0 0.0
        %1922 = vmatpush1.xpose.msra.mxu0 0.0
        %1923 = vmatprep.subr.mxu0 0.0
        %1924 = vmatpush1.xpose.msra.mxu0 0.0
        %1925 = vmatprep.subr.mxu0 0.0
        %1926 = vmatpush1.xpose.msra.mxu0 0.0
        %1927 = vmatprep.subr.mxu0 0.0
        %1928 = vmatpush1.xpose.msra.mxu0 0.0
        %1929 = vmatprep.subr.mxu0 0.0
        %1930 = vmatpush1.xpose.msra.mxu0 0.0
        %1931 = vmatprep.subr.mxu0 0.0
        %1932 = vmatpush1.xpose.msra.mxu0 0.0
        %1933 = vmatprep.subr.mxu0 0.0
        %1934 = vmatpush1.xpose.msra.mxu0 0.0
        %1935 = vmatprep.subr.mxu0 0.0
        %1936 = vmatpush1.xpose.msra.mxu0 0.0
        %1937 = vmatprep.subr.mxu0 0.0
        %1938 = vmatpush1.xpose.msra.mxu0 0.0
        %1939 = vmatprep.subr.mxu0 0.0
        %1940 = vmatpush1.xpose.msra.mxu0 0.0
        %1941 = vmatprep.subr.mxu0 0.0
        %1942 = vmatpush1.xpose.msra.mxu0 0.0
        %1943 = vmatprep.subr.mxu0 0.0
        %1944 = vmatpush1.xpose.msra.mxu0 0.0
        %1945 = vmatprep.subr.mxu0 0.0
        %1946 = vmatpush1.xpose.msra.mxu0 0.0
        %1947 = vmatprep.subr.mxu0 0.0
        %1948 = vmatpush1.xpose.msra.mxu0 0.0
        %1949 = vmatprep.subr.mxu0 0.0
        %1950 = vmatpush1.xpose.msra.mxu0 0.0
        %1951 = vmatprep.subr.mxu0 0.0
        %1952 = vmatpush1.xpose.msra.mxu0 0.0
        %1953 = vmatprep.subr.mxu0 0.0
        %1954 = vmatpush1.xpose.msra.mxu0 0.0
        %1955 = vmatprep.subr.mxu0 0.0
        %1956 = vmatpush1.xpose.msra.mxu0 0.0
        %1957 = vmatprep.subr.mxu0 0.0
        %1958 = vmatpush1.xpose.msra.mxu0 0.0
        %1959 = vmatprep.subr.mxu0 0.0
        %1960 = vmatpush1.xpose.msra.mxu0 0.0
        %1961 = vmatprep.subr.mxu0 0.0
        %1962 = vmatpush1.xpose.msra.mxu0 0.0
        %1963 = vmatprep.subr.mxu0 0.0
        %1964 = vmatpush1.xpose.msra.mxu0 0.0
        %1965 = vmatprep.subr.mxu0 0.0
        %1966 = vmatpush1.xpose.msra.mxu0 0.0
        %1967 = vmatprep.subr.mxu0 0.0
        %1968 = vmatpush1.xpose.msra.mxu0 0.0
        %1969 = vmatprep.subr.mxu0 0.0
        %1970 = vmatpush1.xpose.msra.mxu0 0.0
        %1971 = vmatprep.subr.mxu0 0.0
        %1972 = vmatpush1.xpose.msra.mxu0 0.0
        %1973 = vmatprep.subr.mxu0 0.0
        %1974 = vmatpush1.xpose.msra.mxu0 0.0
        %1975 = vmatprep.subr.mxu0 0.0
        %1976 = vmatpush1.xpose.msra.mxu0 0.0
        %1977 = vmatprep.mubr.f32.mxu0 0.0
        %1978 = vmatmul.mubr.f32.gmra.mrb[0].mxu0 %v1908
        %v1979 = vpop.f32.mrb[0].mxu0
        %v1980 = vadd.f32 0.0, %v1979
        %v1981 = vpop.f32.mrb[0].mxu0
        %1982 = vdwg.mxu0
        %v1983 = vsel %vm673, %v1980, -inf
        %1984 = vmax.xlane.f32.xlu0 %v1983
        %v1985 = vpop.xlane.xlu0 %1984
        %v1986 = vsub.f32 %v1980, %v1985
        %v1987 = vmul.f32 %v1986, 1.442695
        %v1988 = vpow.pop %v1987
        %v1989 = vsel %vm673, %v1988, 0.0
        %1990 = vadd.xlane.f32.xlu0 %v1989
        %v1991 = vpop.xlane.xlu0 %1990
        %v1992 = vrcp.pop %v1991
        %v1993 = vmul.f32 %v1988, %v1992
        %v1995 = vsel %vm673, %v1993, 0
        %1997 = vmatprep.subr.mxu0 0.0
        %1998 = vmatpush1.msra.mxu0 %v1904
        %1999 = vmatprep.subr.mxu0 0.0
        %2000 = vmatpush1.msra.mxu0 0.0
        %2001 = vmatprep.subr.mxu0 0.0
        %2002 = vmatpush1.msra.mxu0 0.0
        %2003 = vmatprep.subr.mxu0 0.0
        %2004 = vmatpush1.msra.mxu0 0.0
        %2005 = vmatprep.subr.mxu0 0.0
        %2006 = vmatpush1.msra.mxu0 0.0
        %2007 = vmatprep.subr.mxu0 0.0
        %2008 = vmatpush1.msra.mxu0 0.0
        %2009 = vmatprep.subr.mxu0 0.0
        %2010 = vmatpush1.msra.mxu0 0.0
        %2011 = vmatprep.subr.mxu0 0.0
        %2012 = vmatpush1.msra.mxu0 0.0
        %2013 = vmatprep.subr.mxu0 0.0
        %2014 = vmatpush1.msra.mxu0 0.0
        %2015 = vmatprep.subr.mxu0 0.0
        %2016 = vmatpush1.msra.mxu0 0.0
        %2017 = vmatprep.subr.mxu0 0.0
        %2018 = vmatpush1.msra.mxu0 0.0
        %2019 = vmatprep.subr.mxu0 0.0
        %2020 = vmatpush1.msra.mxu0 0.0
        %2021 = vmatprep.subr.mxu0 0.0
        %2022 = vmatpush1.msra.mxu0 0.0
        %2023 = vmatprep.subr.mxu0 0.0
        %2024 = vmatpush1.msra.mxu0 0.0
        %2025 = vmatprep.subr.mxu0 0.0
        %2026 = vmatpush1.msra.mxu0 0.0
        %2027 = vmatprep.subr.mxu0 0.0
        %2028 = vmatpush1.msra.mxu0 0.0
        %2029 = vmatprep.subr.mxu0 0.0
        %2030 = vmatpush1.msra.mxu0 0.0
        %2031 = vmatprep.subr.mxu0 0.0
        %2032 = vmatpush1.msra.mxu0 0.0
        %2033 = vmatprep.subr.mxu0 0.0
        %2034 = vmatpush1.msra.mxu0 0.0
        %2035 = vmatprep.subr.mxu0 0.0
        %2036 = vmatpush1.msra.mxu0 0.0
        %2037 = vmatprep.subr.mxu0 0.0
        %2038 = vmatpush1.msra.mxu0 0.0
        %2039 = vmatprep.subr.mxu0 0.0
        %2040 = vmatpush1.msra.mxu0 0.0
        %2041 = vmatprep.subr.mxu0 0.0
        %2042 = vmatpush1.msra.mxu0 0.0
        %2043 = vmatprep.subr.mxu0 0.0
        %2044 = vmatpush1.msra.mxu0 0.0
        %2045 = vmatprep.subr.mxu0 0.0
        %2046 = vmatpush1.msra.mxu0 0.0
        %2047 = vmatprep.subr.mxu0 0.0
        %2048 = vmatpush1.msra.mxu0 0.0
        %2049 = vmatprep.subr.mxu0 0.0
        %2050 = vmatpush1.msra.mxu0 0.0
        %2051 = vmatprep.subr.mxu0 0.0
        %2052 = vmatpush1.msra.mxu0 0.0
        %2053 = vmatprep.subr.mxu0 0.0
        %2054 = vmatpush1.msra.mxu0 0.0
        %2055 = vmatprep.subr.mxu0 0.0
        %2056 = vmatpush1.msra.mxu0 0.0
        %2057 = vmatprep.subr.mxu0 0.0
        %2058 = vmatpush1.msra.mxu0 0.0
        %2059 = vmatprep.subr.mxu0 0.0
        %2060 = vmatpush1.msra.mxu0 0.0
        %2061 = vmatprep.mubr.f32.mxu0 0.0
        %2062 = vmatmul.mubr.f32.gmra.mrb[0].mxu0 %v1995
        %v2063 = vpop.f32.mrb[0].mxu0
        %v2064 = vadd.f32 0.0, %v2063
        %v2065 = vpop.f32.mrb[0].mxu0
        %2066 = vdwg.mxu0
        %2067 = vst.msk [vmem:[#allocation2 + $0x18] sm:$0xff] %vm673, %v2064
        %v2068 = vld [vmem:[#allocation2] ss:$4 sm:$0xff]
        %v2069 = vld [vmem:[%s9] sm:$0xff]
        %s2070 = scalar_lea.vmem [#allocation2], 1
        %v2071 = vld [vmem:[%s2070] ss:$4 sm:$0xff]
        %s2072 = scalar_lea.vmem %s9, 8
        %v2073 = vld [vmem:[%s2072] sm:$0xff]
        %v2075 = vsel %vm673, %v2071, 0
        %2077 = vmatprep.subr.mxu0 0.0
        %2078 = vmatpush1.msra.mxu0 %v2073
        %2079 = vmatprep.subr.mxu0 0.0
        %2080 = vmatpush1.msra.mxu0 0.0
        %2081 = vmatprep.subr.mxu0 0.0
        %2082 = vmatpush1.msra.mxu0 0.0
        %2083 = vmatprep.subr.mxu0 0.0
        %2084 = vmatpush1.msra.mxu0 0.0
        %2085 = vmatprep.subr.mxu0 0.0
        %2086 = vmatpush1.msra.mxu0 0.0
        %2087 = vmatprep.subr.mxu0 0.0
        %2088 = vmatpush1.msra.mxu0 0.0
        %2089 = vmatprep.subr.mxu0 0.0
        %2090 = vmatpush1.msra.mxu0 0.0
        %2091 = vmatprep.subr.mxu0 0.0
        %2092 = vmatpush1.msra.mxu0 0.0
        %2093 = vmatprep.subr.mxu0 0.0
        %2094 = vmatpush1.msra.mxu0 0.0
        %2095 = vmatprep.subr.mxu0 0.0
        %2096 = vmatpush1.msra.mxu0 0.0
        %2097 = vmatprep.subr.mxu0 0.0
        %2098 = vmatpush1.msra.mxu0 0.0
        %2099 = vmatprep.subr.mxu0 0.0
        %2100 = vmatpush1.msra.mxu0 0.0
        %2101 = vmatprep.subr.mxu0 0.0
        %2102 = vmatpush1.msra.mxu0 0.0
        %2103 = vmatprep.subr.mxu0 0.0
        %2104 = vmatpush1.msra.mxu0 0.0
        %2105 = vmatprep.subr.mxu0 0.0
        %2106 = vmatpush1.msra.mxu0 0.0
        %2107 = vmatprep.subr.mxu0 0.0
        %2108 = vmatpush1.msra.mxu0 0.0
        %2109 = vmatprep.subr.mxu0 0.0
        %2110 = vmatpush1.msra.mxu0 0.0
        %2111 = vmatprep.subr.mxu0 0.0
        %2112 = vmatpush1.msra.mxu0 0.0
        %2113 = vmatprep.subr.mxu0 0.0
        %2114 = vmatpush1.msra.mxu0 0.0
        %2115 = vmatprep.subr.mxu0 0.0
        %2116 = vmatpush1.msra.mxu0 0.0
        %2117 = vmatprep.subr.mxu0 0.0
        %2118 = vmatpush1.msra.mxu0 0.0
        %2119 = vmatprep.subr.mxu0 0.0
        %2120 = vmatpush1.msra.mxu0 0.0
        %2121 = vmatprep.subr.mxu0 0.0
        %2122 = vmatpush1.msra.mxu0 0.0
        %2123 = vmatprep.subr.mxu0 0.0
        %2124 = vmatpush1.msra.mxu0 0.0
        %2125 = vmatprep.subr.mxu0 0.0
        %2126 = vmatpush1.msra.mxu0 0.0
        %2127 = vmatprep.subr.mxu0 0.0
        %2128 = vmatpush1.msra.mxu0 0.0
        %2129 = vmatprep.subr.mxu0 0.0
        %2130 = vmatpush1.msra.mxu0 0.0
        %2131 = vmatprep.subr.mxu0 0.0
        %2132 = vmatpush1.msra.mxu0 0.0
        %2133 = vmatprep.subr.mxu0 0.0
        %2134 = vmatpush1.msra.mxu0 0.0
        %2135 = vmatprep.subr.mxu0 0.0
        %2136 = vmatpush1.msra.mxu0 0.0
        %2137 = vmatprep.subr.mxu0 0.0
        %2138 = vmatpush1.msra.mxu0 0.0
        %2139 = vmatprep.subr.mxu0 0.0
        %2140 = vmatpush1.msra.mxu0 0.0
        %2141 = vmatprep.mubr.f32.mxu0 0.0
        %2142 = vmatmul.mubr.f32.gmra.mrb[0].mxu0 %v2075
        %v2143 = vpop.f32.mrb[0].mxu0
        %v2144 = vadd.f32 0.0, %v2143
        %v2145 = vpop.f32.mrb[0].mxu0
        %2146 = vdwg.mxu0
        %v2148 = vsel %vm673, %v2068, 0
        %2150 = vmatprep.subr.mxu0 0.0
        %2151 = vmatpush1.msra.mxu0 %v2069
        %2152 = vmatprep.subr.mxu0 0.0
        %2153 = vmatpush1.msra.mxu0 0.0
        %2154 = vmatprep.subr.mxu0 0.0
        %2155 = vmatpush1.msra.mxu0 0.0
        %2156 = vmatprep.subr.mxu0 0.0
        %2157 = vmatpush1.msra.mxu0 0.0
        %2158 = vmatprep.subr.mxu0 0.0
        %2159 = vmatpush1.msra.mxu0 0.0
        %2160 = vmatprep.subr.mxu0 0.0
        %2161 = vmatpush1.msra.mxu0 0.0
        %2162 = vmatprep.subr.mxu0 0.0
        %2163 = vmatpush1.msra.mxu0 0.0
        %2164 = vmatprep.subr.mxu0 0.0
        %2165 = vmatpush1.msra.mxu0 0.0
        %2166 = vmatprep.subr.mxu0 0.0
        %2167 = vmatpush1.msra.mxu0 0.0
        %2168 = vmatprep.subr.mxu0 0.0
        %2169 = vmatpush1.msra.mxu0 0.0
        %2170 = vmatprep.subr.mxu0 0.0
        %2171 = vmatpush1.msra.mxu0 0.0
        %2172 = vmatprep.subr.mxu0 0.0
        %2173 = vmatpush1.msra.mxu0 0.0
        %2174 = vmatprep.subr.mxu0 0.0
        %2175 = vmatpush1.msra.mxu0 0.0
        %2176 = vmatprep.subr.mxu0 0.0
        %2177 = vmatpush1.msra.mxu0 0.0
        %2178 = vmatprep.subr.mxu0 0.0
        %2179 = vmatpush1.msra.mxu0 0.0
        %2180 = vmatprep.subr.mxu0 0.0
        %2181 = vmatpush1.msra.mxu0 0.0
        %2182 = vmatprep.subr.mxu0 0.0
        %2183 = vmatpush1.msra.mxu0 0.0
        %2184 = vmatprep.subr.mxu0 0.0
        %2185 = vmatpush1.msra.mxu0 0.0
        %2186 = vmatprep.subr.mxu0 0.0
        %2187 = vmatpush1.msra.mxu0 0.0
        %2188 = vmatprep.subr.mxu0 0.0
        %2189 = vmatpush1.msra.mxu0 0.0
        %2190 = vmatprep.subr.mxu0 0.0
        %2191 = vmatpush1.msra.mxu0 0.0
        %2192 = vmatprep.subr.mxu0 0.0
        %2193 = vmatpush1.msra.mxu0 0.0
        %2194 = vmatprep.subr.mxu0 0.0
        %2195 = vmatpush1.msra.mxu0 0.0
        %2196 = vmatprep.subr.mxu0 0.0
        %2197 = vmatpush1.msra.mxu0 0.0
        %2198 = vmatprep.subr.mxu0 0.0
        %2199 = vmatpush1.msra.mxu0 0.0
        %2200 = vmatprep.subr.mxu0 0.0
        %2201 = vmatpush1.msra.mxu0 0.0
        %2202 = vmatprep.subr.mxu0 0.0
        %2203 = vmatpush1.msra.mxu0 0.0
        %2204 = vmatprep.subr.mxu0 0.0
        %2205 = vmatpush1.msra.mxu0 0.0
        %2206 = vmatprep.subr.mxu0 0.0
        %2207 = vmatpush1.msra.mxu0 0.0
        %2208 = vmatprep.subr.mxu0 0.0
        %2209 = vmatpush1.msra.mxu0 0.0
        %2210 = vmatprep.subr.mxu0 0.0
        %2211 = vmatpush1.msra.mxu0 0.0
        %2212 = vmatprep.subr.mxu0 0.0
        %2213 = vmatpush1.msra.mxu0 0.0
        %2214 = vmatprep.mubr.f32.mxu0 0.0
        %2215 = vmatmul.mubr.f32.gmra.mrb[0].mxu0 %v2148
        %v2216 = vpop.f32.mrb[0].mxu0
        %v2217 = vadd.f32 %v2144, %v2216
        %v2218 = vpop.f32.mrb[0].mxu0
        %2219 = vdwg.mxu0
        %s2220 = scalar_lea.vmem [#allocation2], 2
        %v2221 = vld [vmem:[%s2220] ss:$4 sm:$0xff]
        %s2222 = scalar_lea.vmem %s9, 16
        %v2223 = vld [vmem:[%s2222] sm:$0xff]
        %v2225 = vsel %vm673, %v2221, 0
        %2227 = vmatprep.subr.mxu0 0.0
        %2228 = vmatpush1.msra.mxu0 %v2223
        %2229 = vmatprep.subr.mxu0 0.0
        %2230 = vmatpush1.msra.mxu0 0.0
        %2231 = vmatprep.subr.mxu0 0.0
        %2232 = vmatpush1.msra.mxu0 0.0
        %2233 = vmatprep.subr.mxu0 0.0
        %2234 = vmatpush1.msra.mxu0 0.0
        %2235 = vmatprep.subr.mxu0 0.0
        %2236 = vmatpush1.msra.mxu0 0.0
        %2237 = vmatprep.subr.mxu0 0.0
        %2238 = vmatpush1.msra.mxu0 0.0
        %2239 = vmatprep.subr.mxu0 0.0
        %2240 = vmatpush1.msra.mxu0 0.0
        %2241 = vmatprep.subr.mxu0 0.0
        %2242 = vmatpush1.msra.mxu0 0.0
        %2243 = vmatprep.subr.mxu0 0.0
        %2244 = vmatpush1.msra.mxu0 0.0
        %2245 = vmatprep.subr.mxu0 0.0
        %2246 = vmatpush1.msra.mxu0 0.0
        %2247 = vmatprep.subr.mxu0 0.0
        %2248 = vmatpush1.msra.mxu0 0.0
        %2249 = vmatprep.subr.mxu0 0.0
        %2250 = vmatpush1.msra.mxu0 0.0
        %2251 = vmatprep.subr.mxu0 0.0
        %2252 = vmatpush1.msra.mxu0 0.0
        %2253 = vmatprep.subr.mxu0 0.0
        %2254 = vmatpush1.msra.mxu0 0.0
        %2255 = vmatprep.subr.mxu0 0.0
        %2256 = vmatpush1.msra.mxu0 0.0
        %2257 = vmatprep.subr.mxu0 0.0
        %2258 = vmatpush1.msra.mxu0 0.0
        %2259 = vmatprep.subr.mxu0 0.0
        %2260 = vmatpush1.msra.mxu0 0.0
        %2261 = vmatprep.subr.mxu0 0.0
        %2262 = vmatpush1.msra.mxu0 0.0
        %2263 = vmatprep.subr.mxu0 0.0
        %2264 = vmatpush1.msra.mxu0 0.0
        %2265 = vmatprep.subr.mxu0 0.0
        %2266 = vmatpush1.msra.mxu0 0.0
        %2267 = vmatprep.subr.mxu0 0.0
        %2268 = vmatpush1.msra.mxu0 0.0
        %2269 = vmatprep.subr.mxu0 0.0
        %2270 = vmatpush1.msra.mxu0 0.0
        %2271 = vmatprep.subr.mxu0 0.0
        %2272 = vmatpush1.msra.mxu0 0.0
        %2273 = vmatprep.subr.mxu0 0.0
        %2274 = vmatpush1.msra.mxu0 0.0
        %2275 = vmatprep.subr.mxu0 0.0
        %2276 = vmatpush1.msra.mxu0 0.0
        %2277 = vmatprep.subr.mxu0 0.0
        %2278 = vmatpush1.msra.mxu0 0.0
        %2279 = vmatprep.subr.mxu0 0.0
        %2280 = vmatpush1.msra.mxu0 0.0
        %2281 = vmatprep.subr.mxu0 0.0
        %2282 = vmatpush1.msra.mxu0 0.0
        %2283 = vmatprep.subr.mxu0 0.0
        %2284 = vmatpush1.msra.mxu0 0.0
        %2285 = vmatprep.subr.mxu0 0.0
        %2286 = vmatpush1.msra.mxu0 0.0
        %2287 = vmatprep.subr.mxu0 0.0
        %2288 = vmatpush1.msra.mxu0 0.0
        %2289 = vmatprep.subr.mxu0 0.0
        %2290 = vmatpush1.msra.mxu0 0.0
        %2291 = vmatprep.mubr.f32.mxu0 0.0
        %2292 = vmatmul.mubr.f32.gmra.mrb[0].mxu0 %v2225
        %v2293 = vpop.f32.mrb[0].mxu0
        %v2294 = vadd.f32 0.0, %v2293
        %v2295 = vpop.f32.mrb[0].mxu0
        %2296 = vdwg.mxu0
        %v2297 = vadd.f32 %v2217, %v2294
        %s2298 = scalar_lea.vmem [#allocation2], 3
        %v2299 = vld [vmem:[%s2298] ss:$4 sm:$0xff]
        %s2300 = scalar_lea.vmem %s9, 24
        %v2301 = vld [vmem:[%s2300] sm:$0xff]
        %v2303 = vsel %vm673, %v2299, 0
        %2305 = vmatprep.subr.mxu0 0.0
        %2306 = vmatpush1.msra.mxu0 %v2301
        %2307 = vmatprep.subr.mxu0 0.0
        %2308 = vmatpush1.msra.mxu0 0.0
        %2309 = vmatprep.subr.mxu0 0.0
        %2310 = vmatpush1.msra.mxu0 0.0
        %2311 = vmatprep.subr.mxu0 0.0
        %2312 = vmatpush1.msra.mxu0 0.0
        %2313 = vmatprep.subr.mxu0 0.0
        %2314 = vmatpush1.msra.mxu0 0.0
        %2315 = vmatprep.subr.mxu0 0.0
        %2316 = vmatpush1.msra.mxu0 0.0
        %2317 = vmatprep.subr.mxu0 0.0
        %2318 = vmatpush1.msra.mxu0 0.0
        %2319 = vmatprep.subr.mxu0 0.0
        %2320 = vmatpush1.msra.mxu0 0.0
        %2321 = vmatprep.subr.mxu0 0.0
        %2322 = vmatpush1.msra.mxu0 0.0
        %2323 = vmatprep.subr.mxu0 0.0
        %2324 = vmatpush1.msra.mxu0 0.0
        %2325 = vmatprep.subr.mxu0 0.0
        %2326 = vmatpush1.msra.mxu0 0.0
        %2327 = vmatprep.subr.mxu0 0.0
        %2328 = vmatpush1.msra.mxu0 0.0
        %2329 = vmatprep.subr.mxu0 0.0
        %2330 = vmatpush1.msra.mxu0 0.0
        %2331 = vmatprep.subr.mxu0 0.0
        %2332 = vmatpush1.msra.mxu0 0.0
        %2333 = vmatprep.subr.mxu0 0.0
        %2334 = vmatpush1.msra.mxu0 0.0
        %2335 = vmatprep.subr.mxu0 0.0
        %2336 = vmatpush1.msra.mxu0 0.0
        %2337 = vmatprep.subr.mxu0 0.0
        %2338 = vmatpush1.msra.mxu0 0.0
        %2339 = vmatprep.subr.mxu0 0.0
        %2340 = vmatpush1.msra.mxu0 0.0
        %2341 = vmatprep.subr.mxu0 0.0
        %2342 = vmatpush1.msra.mxu0 0.0
        %2343 = vmatprep.subr.mxu0 0.0
        %2344 = vmatpush1.msra.mxu0 0.0
        %2345 = vmatprep.subr.mxu0 0.0
        %2346 = vmatpush1.msra.mxu0 0.0
        %2347 = vmatprep.subr.mxu0 0.0
        %2348 = vmatpush1.msra.mxu0 0.0
        %2349 = vmatprep.subr.mxu0 0.0
        %2350 = vmatpush1.msra.mxu0 0.0
        %2351 = vmatprep.subr.mxu0 0.0
        %2352 = vmatpush1.msra.mxu0 0.0
        %2353 = vmatprep.subr.mxu0 0.0
        %2354 = vmatpush1.msra.mxu0 0.0
        %2355 = vmatprep.subr.mxu0 0.0
        %2356 = vmatpush1.msra.mxu0 0.0
        %2357 = vmatprep.subr.mxu0 0.0
        %2358 = vmatpush1.msra.mxu0 0.0
        %2359 = vmatprep.subr.mxu0 0.0
        %2360 = vmatpush1.msra.mxu0 0.0
        %2361 = vmatprep.subr.mxu0 0.0
        %2362 = vmatpush1.msra.mxu0 0.0
        %2363 = vmatprep.subr.mxu0 0.0
        %2364 = vmatpush1.msra.mxu0 0.0
        %2365 = vmatprep.subr.mxu0 0.0
        %2366 = vmatpush1.msra.mxu0 0.0
        %2367 = vmatprep.subr.mxu0 0.0
        %2368 = vmatpush1.msra.mxu0 0.0
        %2369 = vmatprep.mubr.f32.mxu0 0.0
        %2370 = vmatmul.mubr.f32.gmra.mrb[0].mxu0 %v2303
        %v2371 = vpop.f32.mrb[0].mxu0
        %v2372 = vadd.f32 0.0, %v2371
        %v2373 = vpop.f32.mrb[0].mxu0
        %2374 = vdwg.mxu0
        %v2375 = vadd.f32 %v2297, %v2372
        %v2376 = vld [vmem:[%s10] sm:$0x1]
        %v2378 = vlaneseq
        %v2379 = vshrl.u32 %v2378, 7
        %v2380 = vsub.s32 0, %v2379
        %v2381 = vrot.slane %v2376, %v2380
        %v2383 = vadd.f32 %v2375, %v2381
        %2384 = vst.msk [vmem:[%s403] sm:$0xff] %vm430, %v2383
        %s2385 = sand.u32 %s279, 1
        %s2386 = scalar_lea.sflag [#allocation4], %s2385
        %s2387 = sand.u32 %s279, 1
        %s2388 = smul.addr %s2387, 8
        %s2389 = scalar_lea.vmem [#allocation3], %s2388
        // Predicated region
        $region65: #{tpu_custom_call.1} parent=63 // pred_check
          %p2390 = pneg %p289
        $region66: #{tpu_custom_call.1} parent=63 // pred_check_branch
          %2392 = sbr.rel (%p2390) target = $region68
        $region67: #{tpu_custom_call.1} parent=63 // pred_region
          %s2394 = ssub.s32 128, 128
          %2395 = vsyncadd %s2386, %s2394
          %s2396 = smul.addr %s25, 128
          %s2397 = scalar_lea.hbm %s11, %s2396
          %s2399 = sshll.u32 %s2389, 4
          %s2400 = int_to_ptr.vmem [resolvable:$true] %s2399
          %2402 = dma.vmem_to_hbm [thread:$0]  %s2400, 128, %s2397, %s2386
        $region68: #{tpu_custom_call.1} parent=63 // pred_fallthru
          _
      $region64: #{tpu_custom_call.1} parent=5 // pred_fallthru
        _
      %p2403 = scmp.le.s32.totalorder 2, %s20
      // Predicated region
      $region69: #{tpu_custom_call.1} parent=5 // pred_check
        %p2404 = pneg %p2403
      $region70: #{tpu_custom_call.1} parent=5 // pred_check_branch
        %2406 = sbr.rel (%p2404) target = $region72
      $region71: #{tpu_custom_call.1} parent=5 // pred_region
        %s2407 = ssub.s32 %s20, 2
        // Predicated region
        $region73: #{tpu_custom_call.1} parent=71 // pred_check
          %p2408 = pneg %p295
        $region74: #{tpu_custom_call.1} parent=71 // pred_check_branch
          %2410 = sbr.rel (%p2408) target = $region76
        $region75: #{tpu_custom_call.1} parent=71 // pred_region
          %s2411 = sand.u32 %s280, 1
          %s2412 = scalar_lea.sflag [#allocation4], %s2411
          %s2413 = sand.u32 %s280, 1
          %s2414 = smul.addr %s2413, 8
          %s2415 = scalar_lea.vmem [#allocation3], %s2414
          %2416 = dma.done %s2412, 128
        $region76: #{tpu_custom_call.1} parent=71 // pred_fallthru
          _
      $region72: #{tpu_custom_call.1} parent=5 // pred_fallthru
        _
    $region6: #{tpu_custom_call.1} parent=1 // loop_footer
      %s24 = sadd.s32 1, %s20
    $region7: #{tpu_custom_call.1} parent=1 // loop_footer_branch
      %19 = sbr.rel target = $region3
    $region8: #{tpu_custom_call.1} parent=1 // loop_exit
      _
    %2417 = vsyncpa [#allocation4], 1
    %s2418 = scalar_lea.sflag [#allocation4], 1
    %2419 = vsyncpa %s2418, 1

</llo_original>
